<compile_context>
chip_gen: v6e
topology: v6e:2x2x1
jax: 0.10.0
libtpu: 0.0.40
codegen_flags: <defaults>
</compile_context>

<pallas_src>
import jax
import jax.numpy as jnp
from jax.experimental import pallas as pl
from jax.experimental.pallas import tpu as pltpu

BN_EPS = 1e-5


# --------------------------------------------------------------------------
# Conv2d (stride 1) with the previous layer's BN affine fused on the input,
# zero padding done in-kernel, im2col matmul, and per-image BN partial stats.
# --------------------------------------------------------------------------
def make_conv_kernel(H, W, K, Cin, Cout, pad):
    def kernel(x_ref, sc_ref, sh_ref, w_ref, b_ref, y_ref, s_ref, m2_ref, zbuf):
        # x_ref : (1, H, W, Cin)    previous layer's pre-BN activation
        # sc/sh : (1, Cin)          previous layer's BN affine (fused here)
        # w_ref : (K*K*Cin, Cout)   im2col weights;  b_ref: (1, Cout)
        # y_ref : (1, H*W, Cout)    this layer's pre-BN activation
        # s_ref / m2_ref : (1, 1, Cout) per-image sum / centered sum-of-squares
        # zbuf  : (H+2p, W+2p, Cin) VMEM scratch holding the zero-padded input
        scale = sc_ref[...].reshape(1, 1, Cin)
        shift = sh_ref[...].reshape(1, 1, Cin)
        z = x_ref[0] * scale + shift                       # (H, W, Cin)

        if pad:
            zbuf[...] = jnp.zeros(zbuf.shape, zbuf.dtype)  # zero border
        zbuf[pad:pad + H, pad:pad + W, :] = z

        # im2col: K*K shifted taps concatenated on the lane axis, one matmul.
        taps = [zbuf[kh:kh + H, kw:kw + W, :]
                for kh in range(K) for kw in range(K)]     # each (H, W, Cin)
        patches = taps[0] if len(taps) == 1 else jnp.concatenate(taps, axis=-1)
        lhs = patches.reshape(H * W, K * K * Cin)          # (H*W, K*K*Cin)
        acc = jnp.dot(lhs, w_ref[...], preferred_element_type=jnp.float32)
        acc = acc + b_ref[...]                             # (H*W, Cout)
        y_ref[0] = acc                                     # single slab store

        # Per-image BN partials, computed once from the finished slab
        # (centered second moment -> numerically stable combine in wrapper).
        s = jnp.sum(acc, axis=0, keepdims=True)            # (1, Cout)
        mu = s * (1.0 / (H * W))
        d = acc - mu
        s_ref[0] = s
        m2_ref[0] = jnp.sum(d * d, axis=0, keepdims=True)
    return kernel


def conv_bn_stats(x4d, in_scale, in_shift, w2d, b, K, pad):
    N, H, W, Cin = x4d.shape
    Cout = w2d.shape[-1]
    Hp, Wp = H + 2 * pad, W + 2 * pad
    y, s, m2 = pl.pallas_call(
        make_conv_kernel(H, W, K, Cin, Cout, pad),
        out_shape=(jax.ShapeDtypeStruct((N, H * W, Cout), jnp.float32),
                   jax.ShapeDtypeStruct((N, 1, Cout), jnp.float32),
                   jax.ShapeDtypeStruct((N, 1, Cout), jnp.float32)),
        grid=(N,),
        in_specs=[pl.BlockSpec((1, H, W, Cin), lambda n: (n, 0, 0, 0)),
                  pl.BlockSpec((1, Cin), lambda n: (0, 0)),
                  pl.BlockSpec((1, Cin), lambda n: (0, 0)),
                  pl.BlockSpec((K * K * Cin, Cout), lambda n: (0, 0)),
                  pl.BlockSpec((1, Cout), lambda n: (0, 0))],
        out_specs=(pl.BlockSpec((1, H * W, Cout), lambda n: (n, 0, 0)),
                   pl.BlockSpec((1, 1, Cout), lambda n: (n, 0, 0)),
                   pl.BlockSpec((1, 1, Cout), lambda n: (n, 0, 0))),
        scratch_shapes=[pltpu.VMEM((Hp, Wp, Cin), jnp.float32)],
        compiler_params=pltpu.CompilerParams(
            dimension_semantics=("parallel",)),   # no grid-carried state
    )(x4d, in_scale.reshape(1, Cin), in_shift.reshape(1, Cin),
      w2d, b.reshape(1, Cout))
    return y, s[:, 0, :], m2[:, 0, :]


def vgg_conv_layer(x4d, in_scale, in_shift, p):
    """Conv (+ fused BN of the *previous* layer). Returns the pre-BN output and
    this layer's BN affine, to be fused into the next kernel."""
    K = p["k"]
    pad = 1 if K == 3 else 0
    y, s, m2 = conv_bn_stats(x4d, in_scale, in_shift, p["w2d"], p["b"], K, pad)
    N, HW, C = y.shape
    # Train-mode BatchNorm batch statistics from per-image partials.
    m_n = s / HW                                           # (N, C) image means
    mean = jnp.mean(m_n, axis=0)                           # (C,)
    var = (jnp.sum(m2, axis=0)
           + HW * jnp.sum((m_n - mean) ** 2, axis=0)) / (N * HW)   # biased
    scale = p["gamma"] * jax.lax.rsqrt(var + BN_EPS)
    shift = p["beta"] - mean * scale
    # No ReLU: the original module computes `x - self.relu(x)` and discards it.
    return y, scale, shift


# --------------------------------------------------------------------------
# MaxPool2d(2,2) fused with the last layer's BN affine. Works on a free
# (N, H/2, 2, W/2, 2, C) reshape view of the flat conv output (no transpose).
# --------------------------------------------------------------------------
def make_pool_kernel(C):
    def kernel(x_ref, sc_ref, sh_ref, o_ref):
        # x_ref: (1, H2, 2, W2, 2, C)   o_ref: (1, H2, 1, W2, 1, C)
        scale = sc_ref[...].reshape(1, 1, 1, 1, 1, C)
        shift = sh_ref[...].reshape(1, 1, 1, 1, 1, C)
        z = x_ref[...] * scale + shift                     # fused BN
        m = jnp.maximum(z[:, :, 0:1], z[:, :, 1:2])        # pool over H pair
        o_ref[...] = jnp.maximum(m[:, :, :, :, 0:1, :],
                                 m[:, :, :, :, 1:2, :])    # pool over W pair
    return kernel


def maxpool2x2_bn(y_flat, H, W, scale, shift):
    N, HW, C = y_flat.shape
    H2, W2 = H // 2, W // 2                 # NOTE: assumes even H, W (as here)
    xr = y_flat.reshape(N, H2, 2, W2, 2, C)                # free view
    out = pl.pallas_call(
        make_pool_kernel(C),
        out_shape=jax.ShapeDtypeStruct((N, H2, 1, W2, 1, C), jnp.float32),
        grid=(N,),
        in_specs=[pl.BlockSpec((1, H2, 2, W2, 2, C),
                               lambda n: (n, 0, 0, 0, 0, 0)),
                  pl.BlockSpec((1, C), lambda n: (0, 0)),
                  pl.BlockSpec((1, C), lambda n: (0, 0))],
        out_specs=pl.BlockSpec((1, H2, 1, W2, 1, C),
                               lambda n: (n, 0, 0, 0, 0, 0)),
        compiler_params=pltpu.CompilerParams(
            dimension_semantics=("parallel",)),
    )(xr, scale.reshape(1, C), shift.reshape(1, C))
    return out.reshape(N, H2, W2, C)


# --------------------------------------------------------------------------
# Module-level glue.
# --------------------------------------------------------------------------
class VGGBlockPallas:
    def __init__(self, key, in_channel, output_channel, num_convs,
                 last_1conv=False):
        assert num_convs <= 2 or in_channel == output_channel, (
            "middle convs map in_channel->output_channel (as in the PyTorch "
            "module), so chaining requires in_channel == output_channel")
        k_first = 1 if last_1conv else 3     # second first_conv assignment wins
        keys = jax.random.split(key, max(num_convs, 2))
        self.layers = [self._init_conv(keys[0], in_channel, output_channel,
                                       k_first)]
        for i in range(num_convs - 2):       # middle convs: in_channel -> out
            self.layers.append(self._init_conv(keys[i + 1], in_channel,
                                               output_channel, 3))

    @staticmethod
    def _init_conv(key, cin, cout, k):
        kw_, kb, kg, kbe = jax.random.split(key, 4)
        w_oihw = jax.random.normal(kw_, (cout, cin, k, k), jnp.float32) * 0.1
        w_hwio = jnp.transpose(w_oihw, (2, 3, 1, 0))
        b = jax.random.normal(kb, (cout,), jnp.float32) * 0.1
        gamma = 1.0 + 0.1 * jax.random.normal(kg, (cout,), jnp.float32)
        beta = 0.1 * jax.random.normal(kbe, (cout,), jnp.float32)
        return {"k": k, "w_oihw": w_oihw,
                "w2d": w_hwio.reshape(k * k * cin, cout),   # im2col layout
                "b": b, "gamma": gamma, "beta": beta}

    def __call__(self, x_nchw):
        N, C, H, W = x_nchw.shape
        x = jnp.transpose(x_nchw, (0, 2, 3, 1))            # NCHW -> NHWC
        scale = jnp.ones((C,), jnp.float32)                # identity affine
        shift = jnp.zeros((C,), jnp.float32)
        y = None
        for p in self.layers:
            y, scale, shift = vgg_conv_layer(x, scale, shift, p)
            x = y.reshape(N, H, W, -1)                     # free view
        out = maxpool2x2_bn(y, H, W, scale, shift)         # last BN fused here
        return jnp.transpose(out, (0, 3, 1, 2))            # NHWC -> NCHW


# --------------------------------------------------------------------------
# Pure-JAX reference (correctness cross-check).
# --------------------------------------------------------------------------
def reference_block(x_nchw, layers):
    x = x_nchw
    for p in layers:
        k = p["k"]
        pad = 1 if k == 3 else 0
        y = jax.lax.conv_general_dilated(
            x, p["w_oihw"], window_strides=(1, 1),
            padding=[(pad, pad), (pad, pad)],
            dimension_numbers=("NCHW", "OIHW", "NCHW"))
        y = y + p["b"][None, :, None, None]
        mean = jnp.mean(y, axis=(0, 2, 3), keepdims=True)
        var = jnp.var(y, axis=(0, 2, 3), keepdims=True)    # biased (train mode)
        x = ((y - mean) / jnp.sqrt(var + BN_EPS)
             * p["gamma"][None, :, None, None]
             + p["beta"][None, :, None, None])
    N, C, H, W = x.shape
    return x.reshape(N, C, H // 2, 2, W // 2, 2).max(axis=(3, 5))


if __name__ == "__main__":
    key = jax.random.PRNGKey(0)
    kx, kp = jax.random.split(key)

    # in_channel == output_channel so the (buggy) middle convs stay valid.
    N, C, Hs, Ws = 2, 4, 16, 16
    x = jax.random.normal(kx, (N, C, Hs, Ws), jnp.float32)

    block = VGGBlockPallas(kp, in_channel=C, output_channel=C, num_convs=3,
                           last_1conv=False)
    out = jax.block_until_ready(block(x))
    assert out.shape == (N, C, Hs // 2, Ws // 2), out.shape

    ref = jax.block_until_ready(reference_block(x, block.layers))
    err = float(jnp.max(jnp.abs(out - ref)))
    assert err < 2e-3, f"max abs err {err}"

    print("KERNEL_OK")
</pallas_src>

<mosaic_0001>
module attributes {stable_mosaic.version = 11 : i64} {
  func.func @kernel(%arg0: i32, %arg1: memref<1x16x16x4xf32, #tpu.memory_space<vmem>>, %arg2: memref<1x4xf32, #tpu.memory_space<vmem>>, %arg3: memref<1x4xf32, #tpu.memory_space<vmem>>, %arg4: memref<36x4xf32, #tpu.memory_space<vmem>>, %arg5: memref<1x4xf32, #tpu.memory_space<vmem>>, %arg6: memref<1x256x4xf32, #tpu.memory_space<vmem>>, %arg7: memref<1x1x4xf32, #tpu.memory_space<vmem>>, %arg8: memref<1x1x4xf32, #tpu.memory_space<vmem>>, %arg9: memref<18x18x4xf32, #tpu.memory_space<vmem>>) attributes {dimension_semantics = [#tpu.dimension_semantics<parallel>], iteration_bounds = array<i64: 2>, scalar_prefetch = 0 : i64, scratch_operands = 1 : i64, tpu.core_type = #tpu.core_type<tc>, window_params = [{transform_indices = @transform_0, window_bounds = array<i64: 1, 16, 16, 4>}, {pipeline_mode = #tpu.pipeline_mode<synchronous>, transform_indices = @transform_1, window_bounds = array<i64: 1, 4>}, {pipeline_mode = #tpu.pipeline_mode<synchronous>, transform_indices = @transform_2, window_bounds = array<i64: 1, 4>}, {pipeline_mode = #tpu.pipeline_mode<synchronous>, transform_indices = @transform_3, window_bounds = array<i64: 36, 4>}, {pipeline_mode = #tpu.pipeline_mode<synchronous>, transform_indices = @transform_4, window_bounds = array<i64: 1, 4>}, {transform_indices = @transform_5, window_bounds = array<i64: 1, 256, 4>}, {transform_indices = @transform_6, window_bounds = array<i64: 1, 1, 4>}, {transform_indices = @transform_7, window_bounds = array<i64: 1, 1, 4>}]} {
    %c0 = arith.constant 0 : index
    %c0_0 = arith.constant 0 : index
    %0 = vector.load %arg2[%c0, %c0_0] : memref<1x4xf32, #tpu.memory_space<vmem>>, vector<1x4xf32>
    %1 = vector.shape_cast %0 : vector<1x4xf32> to vector<1x1x4xf32>
    %c0_1 = arith.constant 0 : index
    %c0_2 = arith.constant 0 : index
    %2 = vector.load %arg3[%c0_1, %c0_2] : memref<1x4xf32, #tpu.memory_space<vmem>>, vector<1x4xf32>
    %3 = vector.shape_cast %2 : vector<1x4xf32> to vector<1x1x4xf32>
    %c0_3 = arith.constant 0 : index
    %c0_4 = arith.constant 0 : index
    %c0_5 = arith.constant 0 : index
    %c0_6 = arith.constant 0 : index
    %4 = vector.load %arg1[%c0_3, %c0_4, %c0_5, %c0_6] : memref<1x16x16x4xf32, #tpu.memory_space<vmem>>, vector<1x16x16x4xf32>
    %5 = vector.shape_cast %4 : vector<1x16x16x4xf32> to vector<16x16x4xf32>
    %6 = vector.broadcast %1 : vector<1x1x4xf32> to vector<16x16x4xf32>
    %7 = arith.mulf %5, %6 : vector<16x16x4xf32>
    %8 = vector.broadcast %3 : vector<1x1x4xf32> to vector<16x16x4xf32>
    %9 = arith.addf %7, %8 : vector<16x16x4xf32>
    %cst = arith.constant 0.000000e+00 : f32
    %10 = vector.broadcast %cst : f32 to vector<18x18x4xf32>
    %c0_7 = arith.constant 0 : index
    %c0_8 = arith.constant 0 : index
    %c0_9 = arith.constant 0 : index
    %11 = vector.load %arg9[%c0_7, %c0_8, %c0_9] : memref<18x18x4xf32, #tpu.memory_space<vmem>>, vector<18x18x4xf32>
    tpu.vector_store %arg9[%c0_7, %c0_8, %c0_9], %10 {strides = array<i32>} : memref<18x18x4xf32, #tpu.memory_space<vmem>>, vector<18x18x4xf32>,
    %c1 = arith.constant 1 : index
    %c1_10 = arith.constant 1 : index
    %c0_11 = arith.constant 0 : index
    %12 = vector.load %arg9[%c1, %c1_10, %c0_11] : memref<18x18x4xf32, #tpu.memory_space<vmem>>, vector<16x16x4xf32>
    tpu.vector_store %arg9[%c1, %c1_10, %c0_11], %9 {strides = array<i32>} : memref<18x18x4xf32, #tpu.memory_space<vmem>>, vector<16x16x4xf32>,
    %c0_12 = arith.constant 0 : index
    %c0_13 = arith.constant 0 : index
    %c0_14 = arith.constant 0 : index
    %13 = vector.load %arg9[%c0_12, %c0_13, %c0_14] : memref<18x18x4xf32, #tpu.memory_space<vmem>>, vector<16x16x4xf32>
    %c0_15 = arith.constant 0 : index
    %c1_16 = arith.constant 1 : index
    %c0_17 = arith.constant 0 : index
    %14 = vector.load %arg9[%c0_15, %c1_16, %c0_17] : memref<18x18x4xf32, #tpu.memory_space<vmem>>, vector<16x16x4xf32>
    %c0_18 = arith.constant 0 : index
    %c2 = arith.constant 2 : index
    %c0_19 = arith.constant 0 : index
    %15 = vector.load %arg9[%c0_18, %c2, %c0_19] : memref<18x18x4xf32, #tpu.memory_space<vmem>>, vector<16x16x4xf32>
    %c1_20 = arith.constant 1 : index
    %c0_21 = arith.constant 0 : index
    %c0_22 = arith.constant 0 : index
    %16 = vector.load %arg9[%c1_20, %c0_21, %c0_22] : memref<18x18x4xf32, #tpu.memory_space<vmem>>, vector<16x16x4xf32>
    %c1_23 = arith.constant 1 : index
    %c1_24 = arith.constant 1 : index
    %c0_25 = arith.constant 0 : index
    %17 = vector.load %arg9[%c1_23, %c1_24, %c0_25] : memref<18x18x4xf32, #tpu.memory_space<vmem>>, vector<16x16x4xf32>
    %c1_26 = arith.constant 1 : index
    %c2_27 = arith.constant 2 : index
    %c0_28 = arith.constant 0 : index
    %18 = vector.load %arg9[%c1_26, %c2_27, %c0_28] : memref<18x18x4xf32, #tpu.memory_space<vmem>>, vector<16x16x4xf32>
    %c2_29 = arith.constant 2 : index
    %c0_30 = arith.constant 0 : index
    %c0_31 = arith.constant 0 : index
    %19 = vector.load %arg9[%c2_29, %c0_30, %c0_31] : memref<18x18x4xf32, #tpu.memory_space<vmem>>, vector<16x16x4xf32>
    %c2_32 = arith.constant 2 : index
    %c1_33 = arith.constant 1 : index
    %c0_34 = arith.constant 0 : index
    %20 = vector.load %arg9[%c2_32, %c1_33, %c0_34] : memref<18x18x4xf32, #tpu.memory_space<vmem>>, vector<16x16x4xf32>
    %c2_35 = arith.constant 2 : index
    %c2_36 = arith.constant 2 : index
    %c0_37 = arith.constant 0 : index
    %21 = vector.load %arg9[%c2_35, %c2_36, %c0_37] : memref<18x18x4xf32, #tpu.memory_space<vmem>>, vector<16x16x4xf32>
    %22 = tpu.concatenate %13, %14, %15, %16, %17, %18, %19, %20, %21 in 2 : vector<16x16x4xf32>, vector<16x16x4xf32>, vector<16x16x4xf32>, vector<16x16x4xf32>, vector<16x16x4xf32>, vector<16x16x4xf32>, vector<16x16x4xf32>, vector<16x16x4xf32>, vector<16x16x4xf32> -> vector<16x16x36xf32>
    %23 = vector.shape_cast %22 : vector<16x16x36xf32> to vector<256x36xf32>
    %c0_38 = arith.constant 0 : index
    %c0_39 = arith.constant 0 : index
    %24 = vector.load %arg4[%c0_38, %c0_39] : memref<36x4xf32, #tpu.memory_space<vmem>>, vector<36x4xf32>
    %cst_40 = arith.constant dense<0.000000e+00> : vector<256x4xf32>
    %25 = tpu.matmul %23, %24, %cst_40 {dimension_numbers = #tpu.dot_dimension_numbers<[1], [0], [0], [1], [0, 0, 1, 1], [], []>} : vector<256x36xf32>, vector<36x4xf32>, vector<256x4xf32> -> vector<256x4xf32>
    %c0_41 = arith.constant 0 : index
    %c0_42 = arith.constant 0 : index
    %26 = vector.load %arg5[%c0_41, %c0_42] : memref<1x4xf32, #tpu.memory_space<vmem>>, vector<1x4xf32>
    %27 = vector.broadcast %26 : vector<1x4xf32> to vector<256x4xf32>
    %28 = arith.addf %25, %27 : vector<256x4xf32>
    %c0_43 = arith.constant 0 : index
    %c0_44 = arith.constant 0 : index
    %c0_45 = arith.constant 0 : index
    %29 = vector.load %arg6[%c0_43, %c0_44, %c0_45] : memref<1x256x4xf32, #tpu.memory_space<vmem>>, vector<1x256x4xf32>
    %30 = vector.shape_cast %29 : vector<1x256x4xf32> to vector<256x4xf32>
    %31 = vector.shape_cast %28 : vector<256x4xf32> to vector<1x256x4xf32>
    tpu.vector_store %arg6[%c0_43, %c0_44, %c0_45], %31 {strides = array<i32>} : memref<1x256x4xf32, #tpu.memory_space<vmem>>, vector<1x256x4xf32>,
    %cst_46 = arith.constant dense<0.000000e+00> : vector<4xf32>
    %32 = vector.multi_reduction <add>, %28, %cst_46 [0] : vector<256x4xf32> to vector<4xf32>
    %33 = vector.shape_cast %32 : vector<4xf32> to vector<1x4xf32>
    %cst_47 = arith.constant 3.906250e-03 : f32
    %34 = vector.broadcast %cst_47 : f32 to vector<1x4xf32>
    %35 = arith.mulf %33, %34 : vector<1x4xf32>
    %36 = vector.broadcast %35 : vector<1x4xf32> to vector<256x4xf32>
    %37 = arith.subf %28, %36 : vector<256x4xf32>
    %c0_48 = arith.constant 0 : index
    %c0_49 = arith.constant 0 : index
    %c0_50 = arith.constant 0 : index
    %38 = vector.load %arg7[%c0_48, %c0_49, %c0_50] : memref<1x1x4xf32, #tpu.memory_space<vmem>>, vector<1x1x4xf32>
    %39 = vector.shape_cast %38 : vector<1x1x4xf32> to vector<1x4xf32>
    %40 = vector.shape_cast %33 : vector<1x4xf32> to vector<1x1x4xf32>
    tpu.vector_store %arg7[%c0_48, %c0_49, %c0_50], %40 {strides = array<i32>} : memref<1x1x4xf32, #tpu.memory_space<vmem>>, vector<1x1x4xf32>,
    %41 = arith.mulf %37, %37 : vector<256x4xf32>
    %cst_51 = arith.constant dense<0.000000e+00> : vector<4xf32>
    %42 = vector.multi_reduction <add>, %41, %cst_51 [0] : vector<256x4xf32> to vector<4xf32>
    %43 = vector.shape_cast %42 : vector<4xf32> to vector<1x4xf32>
    %c0_52 = arith.constant 0 : index
    %c0_53 = arith.constant 0 : index
    %c0_54 = arith.constant 0 : index
    %44 = vector.load %arg8[%c0_52, %c0_53, %c0_54] : memref<1x1x4xf32, #tpu.memory_space<vmem>>, vector<1x1x4xf32>
    %45 = vector.shape_cast %44 : vector<1x1x4xf32> to vector<1x4xf32>
    %46 = vector.shape_cast %43 : vector<1x4xf32> to vector<1x1x4xf32>
    tpu.vector_store %arg8[%c0_52, %c0_53, %c0_54], %46 {strides = array<i32>} : memref<1x1x4xf32, #tpu.memory_space<vmem>>, vector<1x1x4xf32>,
    return
  }
  func.func @transform_0(%arg0: i32) -> (i32, i32, i32, i32) {
    %c0_i32 = arith.constant 0 : i32
    %c0_i32_0 = arith.constant 0 : i32
    %c0_i32_1 = arith.constant 0 : i32
    %c0_i32_2 = arith.constant 0 : i32
    return %arg0, %c0_i32, %c0_i32_0, %c0_i32_1 : i32, i32, i32, i32
  }
  func.func @transform_1(%arg0: i32) -> (i32, i32) {
    %c0_i32 = arith.constant 0 : i32
    %c0_i32_0 = arith.constant 0 : i32
    %c0_i32_1 = arith.constant 0 : i32
    return %c0_i32, %c0_i32_0 : i32, i32
  }
  func.func @transform_2(%arg0: i32) -> (i32, i32) {
    %c0_i32 = arith.constant 0 : i32
    %c0_i32_0 = arith.constant 0 : i32
    %c0_i32_1 = arith.constant 0 : i32
    return %c0_i32, %c0_i32_0 : i32, i32
  }
  func.func @transform_3(%arg0: i32) -> (i32, i32) {
    %c0_i32 = arith.constant 0 : i32
    %c0_i32_0 = arith.constant 0 : i32
    %c0_i32_1 = arith.constant 0 : i32
    return %c0_i32, %c0_i32_0 : i32, i32
  }
  func.func @transform_4(%arg0: i32) -> (i32, i32) {
    %c0_i32 = arith.constant 0 : i32
    %c0_i32_0 = arith.constant 0 : i32
    %c0_i32_1 = arith.constant 0 : i32
    return %c0_i32, %c0_i32_0 : i32, i32
  }
  func.func @transform_5(%arg0: i32) -> (i32, i32, i32) {
    %c0_i32 = arith.constant 0 : i32
    %c0_i32_0 = arith.constant 0 : i32
    %c0_i32_1 = arith.constant 0 : i32
    return %arg0, %c0_i32, %c0_i32_0 : i32, i32, i32
  }
  func.func @transform_6(%arg0: i32) -> (i32, i32, i32) {
    %c0_i32 = arith.constant 0 : i32
    %c0_i32_0 = arith.constant 0 : i32
    %c0_i32_1 = arith.constant 0 : i32
    return %arg0, %c0_i32, %c0_i32_0 : i32, i32, i32
  }
  func.func @transform_7(%arg0: i32) -> (i32, i32, i32) {
    %c0_i32 = arith.constant 0 : i32
    %c0_i32_0 = arith.constant 0 : i32
    %c0_i32_1 = arith.constant 0 : i32
    return %arg0, %c0_i32, %c0_i32_0 : i32, i32, i32
  }
}

</mosaic_0001>

<llo_original>
// kernel: tpu_custom_call.1
$region0: #{tpu_custom_call.1}
  #allocation0 [shape = 'u32[]', space=smem, size = 0x4, offset = 0x4, fixed_abs, tag = 'smem constant byte address 0x4 - core index']
  #allocation1 [shape = 'u32[144,128]{1,0:T(1,128)}', space=vmem, size = 0x12000, scoped, tag = 'internal scratch']
  #allocation2 [shape = 'f32[18,18,4]{2,1,0:T(8,128)}', space=vmem, size = 0x36000, scoped, tag = 'scratch operand']
  %s0 = inlined_call_operand.vmem [shape: f32[2,16,16,4], index: 0, kind: input, shape index: {}]
  %s1 = inlined_call_operand.vmem [shape: f32[1,4], index: 1, kind: input, shape index: {}]
  %s2 = inlined_call_operand.vmem [shape: f32[1,4], index: 2, kind: input, shape index: {}]
  %s3 = inlined_call_operand.vmem [shape: f32[36,4], index: 3, kind: input, shape index: {}]
  %s4 = inlined_call_operand.vmem [shape: f32[1,4], index: 4, kind: input, shape index: {}]
  %s5 = inlined_call_operand.vmem [shape: f32[2,256,4], index: 5, kind: output, shape index: {0}]
  %s6 = inlined_call_operand.hbm [shape: f32[2,1,4], index: 6, kind: output, shape index: {1}]
  %s7 = inlined_call_operand.hbm [shape: f32[2,1,4], index: 7, kind: output, shape index: {2}]
  %8 = xla_tuple %s5, %s6, %s7
  %s9 = sld [smem:[#allocation0]]
  $region69: #{tpu_custom_call.1} parent=0
    _
  %s11 = ssub.s32 1, %s9
  %s12 = scalar_select 0, %s11, %s9
  $region1: #{tpu_custom_call.1} parent=0
    #allocation3 [shape = 'u8[1024]{0}', space=vmem, size = 0x400, scoped, tag = 'output window, operand 1']
    #allocation4 [shape = 's32[2]{0}', space=sflag, size = 0x8, scoped, tag = 'scoped memory for tpu_custom_call.1']
    #allocation5 [shape = 'u8[1024]{0}', space=vmem, size = 0x400, scoped, tag = 'output window, operand 2']
    #allocation6 [shape = 's32[2]{0}', space=sflag, size = 0x8, scoped, tag = 'scoped memory for tpu_custom_call.1']
    %13 = vsyncpa [#allocation4], 0
    %s14 = scalar_lea.sflag [#allocation4], 1
    %15 = vsyncpa %s14, 0
    %16 = vsyncpa [#allocation6], 0
    %s17 = scalar_lea.sflag [#allocation6], 1
    %18 = vsyncpa %s17, 0
    loop: start=0, step=1, limit=4
    $region2: #{tpu_custom_call.1} parent=1 // loop_pre_header
      _
    $region3: #{tpu_custom_call.1} parent=1 // loop_header
      %s20 = sphi 0, %s24
      %p21 = scmp.ge.s32.totalorder %s20, 4
      %s30 = sphi 0, %s32
      %s33 = sphi 0, %s30
      %s34 = sphi 0, %s33
      %s50 = sphi 0, %s34
      %s54 = sphi 0, %s54
      %s56 = sphi 0, %s54
      %s57 = sphi 0, %s56
      %s71 = sphi 0, %s57
      %s75 = sphi 0, %s75
      %s77 = sphi 0, %s75
      %s78 = sphi 0, %s77
      %s92 = sphi 0, %s78
      %s96 = sphi 0, %s96
      %s98 = sphi 0, %s96
      %s99 = sphi 0, %s98
      %s113 = sphi 0, %s99
      %s117 = sphi 0, %s117
      %s119 = sphi 0, %s117
      %s120 = sphi 0, %s119
      %s134 = sphi 0, %s120
      %s140 = sphi 0, %s142
      %s143 = sphi 0, %s140
      %s144 = sphi 0, %s143
      %s160 = sphi 0, %s144
      %s166 = sphi 0, %s168
      %s169 = sphi 0, %s166
      %s170 = sphi 0, %s169
      %s186 = sphi 0, %s170
      %s192 = sphi 0, %s194
      %s195 = sphi 0, %s192
      %s196 = sphi 0, %s195
      %s212 = sphi 0, %s196
    $region4: #{tpu_custom_call.1} parent=1 // loop_header_branch
      %23 = sbr.rel (%p21) target = $region8
    $region5: #{tpu_custom_call.1} parent=1 // loop_body
      %s25 = ssub.s32 %s20, 1
      %s26 = ssub.s32 %s20, 2
      %s27 = sadd.s32 %s20, 1
      %s28 = ssub.s32 %s20, %s27
      %p29 = scmp.eq.s32.totalorder %s28, 0
      %s31 = sadd.s32 %s30, 1
      %s32 = scalar_select %p29, %s30, %s31
      %p35 = pneg %p29
      %p36 = scmp.eq.s32.totalorder %s20, 1
      %p37 = por %p35, %p36
      %p38 = scmp.ne.s32.totalorder %s30, %s33
      %p39 = scmp.eq.s32.totalorder %s20, 0
      %p40 = por %p38, %p39
      %p41 = scmp.ne.s32.totalorder %s30, %s33
      %p42 = scmp.eq.s32.totalorder %s25, 1
      %p43 = por %p41, %p42
      %p44 = scmp.ne.s32.totalorder %s33, %s34
      %p45 = scmp.eq.s32.totalorder %s25, 0
      %p46 = por %p44, %p45
      %p47 = scmp.ne.s32.totalorder %s33, %s34
      %p48 = scmp.eq.s32.totalorder %s26, 1
      %p49 = por %p47, %p48
      %p51 = scmp.ne.s32.totalorder %s34, %s50
      %p52 = scmp.eq.s32.totalorder %s26, 0
      %p53 = por %p51, %p52
      %s55 = sadd.s32 %s54, 1
      %p58 = scmp.eq.s32.totalorder %s20, 1
      %p59 = scmp.ne.s32.totalorder %s54, %s56
      %p60 = scmp.eq.s32.totalorder %s20, 0
      %p61 = por %p59, %p60
      %p62 = scmp.ne.s32.totalorder %s54, %s56
      %p63 = scmp.eq.s32.totalorder %s25, 1
      %p64 = por %p62, %p63
      %p65 = scmp.ne.s32.totalorder %s56, %s57
      %p66 = scmp.eq.s32.totalorder %s25, 0
      %p67 = por %p65, %p66
      %p68 = scmp.ne.s32.totalorder %s56, %s57
      %p69 = scmp.eq.s32.totalorder %s26, 1
      %p70 = por %p68, %p69
      %p72 = scmp.ne.s32.totalorder %s57, %s71
      %p73 = scmp.eq.s32.totalorder %s26, 0
      %p74 = por %p72, %p73
      %s76 = sadd.s32 %s75, 1
      %p79 = scmp.eq.s32.totalorder %s20, 1
      %p80 = scmp.ne.s32.totalorder %s75, %s77
      %p81 = scmp.eq.s32.totalorder %s20, 0
      %p82 = por %p80, %p81
      %p83 = scmp.ne.s32.totalorder %s75, %s77
      %p84 = scmp.eq.s32.totalorder %s25, 1
      %p85 = por %p83, %p84
      %p86 = scmp.ne.s32.totalorder %s77, %s78
      %p87 = scmp.eq.s32.totalorder %s25, 0
      %p88 = por %p86, %p87
      %p89 = scmp.ne.s32.totalorder %s77, %s78
      %p90 = scmp.eq.s32.totalorder %s26, 1
      %p91 = por %p89, %p90
      %p93 = scmp.ne.s32.totalorder %s78, %s92
      %p94 = scmp.eq.s32.totalorder %s26, 0
      %p95 = por %p93, %p94
      %s97 = sadd.s32 %s96, 1
      %p100 = scmp.eq.s32.totalorder %s20, 1
      %p101 = scmp.ne.s32.totalorder %s96, %s98
      %p102 = scmp.eq.s32.totalorder %s20, 0
      %p103 = por %p101, %p102
      %p104 = scmp.ne.s32.totalorder %s96, %s98
      %p105 = scmp.eq.s32.totalorder %s25, 1
      %p106 = por %p104, %p105
      %p107 = scmp.ne.s32.totalorder %s98, %s99
      %p108 = scmp.eq.s32.totalorder %s25, 0
      %p109 = por %p107, %p108
      %p110 = scmp.ne.s32.totalorder %s98, %s99
      %p111 = scmp.eq.s32.totalorder %s26, 1
      %p112 = por %p110, %p111
      %p114 = scmp.ne.s32.totalorder %s99, %s113
      %p115 = scmp.eq.s32.totalorder %s26, 0
      %p116 = por %p114, %p115
      %s118 = sadd.s32 %s117, 1
      %p121 = scmp.eq.s32.totalorder %s20, 1
      %p122 = scmp.ne.s32.totalorder %s117, %s119
      %p123 = scmp.eq.s32.totalorder %s20, 0
      %p124 = por %p122, %p123
      %p125 = scmp.ne.s32.totalorder %s117, %s119
      %p126 = scmp.eq.s32.totalorder %s25, 1
      %p127 = por %p125, %p126
      %p128 = scmp.ne.s32.totalorder %s119, %s120
      %p129 = scmp.eq.s32.totalorder %s25, 0
      %p130 = por %p128, %p129
      %p131 = scmp.ne.s32.totalorder %s119, %s120
      %p132 = scmp.eq.s32.totalorder %s26, 1
      %p133 = por %p131, %p132
      %p135 = scmp.ne.s32.totalorder %s120, %s134
      %p136 = scmp.eq.s32.totalorder %s26, 0
      %p137 = por %p135, %p136
      %s138 = ssub.s32 %s20, %s27
      %p139 = scmp.eq.s32.totalorder %s138, 0
      %s141 = sadd.s32 %s140, 1
      %s142 = scalar_select %p139, %s140, %s141
      %p145 = pneg %p139
      %p146 = scmp.eq.s32.totalorder %s20, 1
      %p147 = por %p145, %p146
      %p148 = scmp.ne.s32.totalorder %s140, %s143
      %p149 = scmp.eq.s32.totalorder %s20, 0
      %p150 = por %p148, %p149
      %p151 = scmp.ne.s32.totalorder %s140, %s143
      %p152 = scmp.eq.s32.totalorder %s25, 1
      %p153 = por %p151, %p152
      %p154 = scmp.ne.s32.totalorder %s143, %s144
      %p155 = scmp.eq.s32.totalorder %s25, 0
      %p156 = por %p154, %p155
      %p157 = scmp.ne.s32.totalorder %s143, %s144
      %p158 = scmp.eq.s32.totalorder %s26, 1
      %p159 = por %p157, %p158
      %p161 = scmp.ne.s32.totalorder %s144, %s160
      %p162 = scmp.eq.s32.totalorder %s26, 0
      %p163 = por %p161, %p162
      %s164 = ssub.s32 %s20, %s27
      %p165 = scmp.eq.s32.totalorder %s164, 0
      %s167 = sadd.s32 %s166, 1
      %s168 = scalar_select %p165, %s166, %s167
      %p171 = pneg %p165
      %p172 = scmp.eq.s32.totalorder %s20, 1
      %p173 = por %p171, %p172
      %p174 = scmp.ne.s32.totalorder %s166, %s169
      %p175 = scmp.eq.s32.totalorder %s20, 0
      %p176 = por %p174, %p175
      %p177 = scmp.ne.s32.totalorder %s166, %s169
      %p178 = scmp.eq.s32.totalorder %s25, 1
      %p179 = por %p177, %p178
      %p180 = scmp.ne.s32.totalorder %s169, %s170
      %p181 = scmp.eq.s32.totalorder %s25, 0
      %p182 = por %p180, %p181
      %p183 = scmp.ne.s32.totalorder %s169, %s170
      %p184 = scmp.eq.s32.totalorder %s26, 1
      %p185 = por %p183, %p184
      %p187 = scmp.ne.s32.totalorder %s170, %s186
      %p188 = scmp.eq.s32.totalorder %s26, 0
      %p189 = por %p187, %p188
      %s190 = ssub.s32 %s20, %s27
      %p191 = scmp.eq.s32.totalorder %s190, 0
      %s193 = sadd.s32 %s192, 1
      %s194 = scalar_select %p191, %s192, %s193
      %p197 = pneg %p191
      %p198 = scmp.eq.s32.totalorder %s20, 1
      %p199 = por %p197, %p198
      %p200 = scmp.ne.s32.totalorder %s192, %s195
      %p201 = scmp.eq.s32.totalorder %s20, 0
      %p202 = por %p200, %p201
      %p203 = scmp.ne.s32.totalorder %s192, %s195
      %p204 = scmp.eq.s32.totalorder %s25, 1
      %p205 = por %p203, %p204
      %p206 = scmp.ne.s32.totalorder %s195, %s196
      %p207 = scmp.eq.s32.totalorder %s25, 0
      %p208 = por %p206, %p207
      %p209 = scmp.ne.s32.totalorder %s195, %s196
      %p210 = scmp.eq.s32.totalorder %s26, 1
      %p211 = por %p209, %p210
      %p213 = scmp.ne.s32.totalorder %s196, %s212
      %p214 = scmp.eq.s32.totalorder %s26, 0
      %p215 = por %p213, %p214
      %p216 = scmp.le.s32.totalorder 1, %s20
      %p217 = scmp.lt.s32.totalorder %s20, 3
      %p218 = pnand %p216, %p217
      %p219 = pneg %p218
      // Predicated region
      $region9: #{tpu_custom_call.1} parent=5 // pred_check
        _
      $region10: #{tpu_custom_call.1} parent=5 // pred_check_branch
        %221 = sbr.rel (%p218) target = $region12
      $region11: #{tpu_custom_call.1} parent=5 // pred_region
        %s222 = ssub.s32 %s20, 1
        // Predicated region
        $region13: #{tpu_custom_call.1} parent=11 // pred_check
          %p223 = pneg %p67
        $region14: #{tpu_custom_call.1} parent=11 // pred_check_branch
          %225 = sbr.rel (%p223) target = $region16
        $region15: #{tpu_custom_call.1} parent=11 // pred_region
          _
        $region16: #{tpu_custom_call.1} parent=11 // pred_fallthru
          _
        // Predicated region
        $region17: #{tpu_custom_call.1} parent=11 // pred_check
          %p226 = pneg %p88
        $region18: #{tpu_custom_call.1} parent=11 // pred_check_branch
          %228 = sbr.rel (%p226) target = $region20
        $region19: #{tpu_custom_call.1} parent=11 // pred_region
          _
        $region20: #{tpu_custom_call.1} parent=11 // pred_fallthru
          _
        // Predicated region
        $region21: #{tpu_custom_call.1} parent=11 // pred_check
          %p229 = pneg %p109
        $region22: #{tpu_custom_call.1} parent=11 // pred_check_branch
          %231 = sbr.rel (%p229) target = $region24
        $region23: #{tpu_custom_call.1} parent=11 // pred_region
          _
        $region24: #{tpu_custom_call.1} parent=11 // pred_fallthru
          _
        // Predicated region
        $region25: #{tpu_custom_call.1} parent=11 // pred_check
          %p232 = pneg %p130
        $region26: #{tpu_custom_call.1} parent=11 // pred_check_branch
          %234 = sbr.rel (%p232) target = $region28
        $region27: #{tpu_custom_call.1} parent=11 // pred_region
          _
        $region28: #{tpu_custom_call.1} parent=11 // pred_fallthru
          _
      $region12: #{tpu_custom_call.1} parent=5 // pred_fallthru
        _
      %p235 = scmp.lt.s32.totalorder %s20, 2
      // Predicated region
      $region29: #{tpu_custom_call.1} parent=5 // pred_check
        %p236 = pneg %p235
      $region30: #{tpu_custom_call.1} parent=5 // pred_check_branch
        %238 = sbr.rel (%p236) target = $region32
      $region31: #{tpu_custom_call.1} parent=5 // pred_region
        // Predicated region
        $region33: #{tpu_custom_call.1} parent=31 // pred_check
          %p239 = pneg %p40
        $region34: #{tpu_custom_call.1} parent=31 // pred_check_branch
          %241 = sbr.rel (%p239) target = $region36
        $region35: #{tpu_custom_call.1} parent=31 // pred_region
          %p242 = scmp.lt.s32.totalorder %s20, 1
          %s243 = scalar_select %p242, %s20, 1
          %s244 = smul.addr %s243, 32
          %s245 = smul.addr %s244, 8
          %s246 = scalar_lea.vmem %s0, %s245
        $region36: #{tpu_custom_call.1} parent=31 // pred_fallthru
          _
      $region32: #{tpu_custom_call.1} parent=5 // pred_fallthru
        _
      %p247 = scmp.le.s32.totalorder 1, %s20
      %p248 = scmp.lt.s32.totalorder %s20, 3
      %p249 = pnand %p247, %p248
      %p250 = pneg %p249
      // Predicated region
      $region37: #{tpu_custom_call.1} parent=5 // pred_check
        _
      $region38: #{tpu_custom_call.1} parent=5 // pred_check_branch
        %252 = sbr.rel (%p249) target = $region40
      $region39: #{tpu_custom_call.1} parent=5 // pred_region
        %s253 = ssub.s32 %s20, 1
        %p254 = scmp.lt.s32.totalorder %s25, 1
        %s255 = scalar_select %p254, %s25, 1
        %s256 = smul.addr %s255, 32
        %s257 = smul.addr %s256, 8
        %s258 = scalar_lea.vmem %s0, %s257
        %p259 = pneg %p46
        %p260 = pneg %p43
        %p261 = pneg %p67
        %p262 = pneg %p64
        %p263 = pneg %p88
        %p264 = pneg %p85
        %p265 = pneg %p109
        %p266 = pneg %p106
        %p267 = pneg %p130
        %p268 = pneg %p127
        %p269 = pneg %p156
        %p270 = pneg %p153
        %p271 = scmp.lt.s32.totalorder %s25, 1
        %s272 = scalar_select %p271, %s25, 1
        %s273 = smul.addr %s272, 32
        %s274 = smul.addr %s273, 8
        %s275 = scalar_lea.vmem %s5, %s274
        %p276 = pneg %p182
        %p277 = pneg %p179
        %s278 = sand.u32 %s169, 1
        %s279 = scalar_lea.sflag [#allocation4], %s278
        %s280 = sand.u32 %s169, 1
        %s281 = scalar_lea.vmem [#allocation3], %s280
        %p282 = pneg %p208
        %p283 = pneg %p205
        %s284 = sand.u32 %s195, 1
        %s285 = scalar_lea.sflag [#allocation6], %s284
        %s286 = sand.u32 %s195, 1
        %s287 = scalar_lea.vmem [#allocation5], %s286
        %p288 = scmp.lt.s32.totalorder %s25, 1
        %s289 = scalar_select %p288, %s25, 1
        %s290 = smul.addr %s289, 32
        %s291 = smul.addr %s290, 8
        %s292 = scalar_lea.vmem %s0, %s291
        %p293 = scmp.lt.s32.totalorder %s25, 1
        %s294 = scalar_select %p293, %s25, 1
        %s295 = smul.addr %s294, 32
        %s296 = smul.addr %s295, 8
        %s297 = scalar_lea.vmem %s5, %s296
        %v298 = vld [vmem:[%s1] sm:$0x1]
        %v299 = vld [vmem:[%s2] sm:$0x1]
        %v300 = vld [vmem:[%s292] sm:$0xff]
        %v301 = vld [vmem:[%s292 + $0x8] sm:$0xff]
        %v302 = vld [vmem:[%s292 + $0x10] sm:$0xff]
        %v303 = vld [vmem:[%s292 + $0x18] sm:$0xff]
        %v304 = vld [vmem:[%s292 + $0x20] sm:$0xff]
        %v305 = vld [vmem:[%s292 + $0x28] sm:$0xff]
        %v306 = vld [vmem:[%s292 + $0x30] sm:$0xff]
        %v307 = vld [vmem:[%s292 + $0x38] sm:$0xff]
        %v308 = vld [vmem:[%s292 + $0x40] sm:$0xff]
        %v309 = vld [vmem:[%s292 + $0x48] sm:$0xff]
        %v310 = vld [vmem:[%s292 + $0x50] sm:$0xff]
        %v311 = vld [vmem:[%s292 + $0x58] sm:$0xff]
        %v312 = vld [vmem:[%s292 + $0x60] sm:$0xff]
        %v313 = vld [vmem:[%s292 + $0x68] sm:$0xff]
        %v314 = vld [vmem:[%s292 + $0x70] sm:$0xff]
        %v315 = vld [vmem:[%s292 + $0x78] sm:$0xff]
        %v316 = vld [vmem:[%s292 + $0x80] sm:$0xff]
        %v317 = vld [vmem:[%s292 + $0x88] sm:$0xff]
        %v318 = vld [vmem:[%s292 + $0x90] sm:$0xff]
        %v319 = vld [vmem:[%s292 + $0x98] sm:$0xff]
        %v320 = vld [vmem:[%s292 + $0xa0] sm:$0xff]
        %v321 = vld [vmem:[%s292 + $0xa8] sm:$0xff]
        %v322 = vld [vmem:[%s292 + $0xb0] sm:$0xff]
        %v323 = vld [vmem:[%s292 + $0xb8] sm:$0xff]
        %v324 = vld [vmem:[%s292 + $0xc0] sm:$0xff]
        %v325 = vld [vmem:[%s292 + $0xc8] sm:$0xff]
        %v326 = vld [vmem:[%s292 + $0xd0] sm:$0xff]
        %v327 = vld [vmem:[%s292 + $0xd8] sm:$0xff]
        %v328 = vld [vmem:[%s292 + $0xe0] sm:$0xff]
        %v329 = vld [vmem:[%s292 + $0xe8] sm:$0xff]
        %v330 = vld [vmem:[%s292 + $0xf0] sm:$0xff]
        %v331 = vld [vmem:[%s292 + $0xf8] sm:$0xff]
        %v333 = vlaneseq
        %v334 = vshrl.u32 %v333, 7
        %v335 = vsub.s32 0, %v334
        %v336 = vrot.slane %v298, %v335
        %v338 = vmul.f32 %v300, %v336
        %v339 = vmul.f32 %v301, %v336
        %v340 = vmul.f32 %v302, %v336
        %v341 = vmul.f32 %v303, %v336
        %v342 = vmul.f32 %v304, %v336
        %v343 = vmul.f32 %v305, %v336
        %v344 = vmul.f32 %v306, %v336
        %v345 = vmul.f32 %v307, %v336
        %v346 = vmul.f32 %v308, %v336
        %v347 = vmul.f32 %v309, %v336
        %v348 = vmul.f32 %v310, %v336
        %v349 = vmul.f32 %v311, %v336
        %v350 = vmul.f32 %v312, %v336
        %v351 = vmul.f32 %v313, %v336
        %v352 = vmul.f32 %v314, %v336
        %v353 = vmul.f32 %v315, %v336
        %v354 = vmul.f32 %v316, %v336
        %v355 = vmul.f32 %v317, %v336
        %v356 = vmul.f32 %v318, %v336
        %v357 = vmul.f32 %v319, %v336
        %v358 = vmul.f32 %v320, %v336
        %v359 = vmul.f32 %v321, %v336
        %v360 = vmul.f32 %v322, %v336
        %v361 = vmul.f32 %v323, %v336
        %v362 = vmul.f32 %v324, %v336
        %v363 = vmul.f32 %v325, %v336
        %v364 = vmul.f32 %v326, %v336
        %v365 = vmul.f32 %v327, %v336
        %v366 = vmul.f32 %v328, %v336
        %v367 = vmul.f32 %v329, %v336
        %v368 = vmul.f32 %v330, %v336
        %v369 = vmul.f32 %v331, %v336
        %v371 = vlaneseq
        %v372 = vshrl.u32 %v371, 7
        %v373 = vsub.s32 0, %v372
        %v374 = vrot.slane %v299, %v373
        %v376 = vadd.f32 %v338, %v374
        %v377 = vadd.f32 %v339, %v374
        %v378 = vadd.f32 %v340, %v374
        %v379 = vadd.f32 %v341, %v374
        %v380 = vadd.f32 %v342, %v374
        %v381 = vadd.f32 %v343, %v374
        %v382 = vadd.f32 %v344, %v374
        %v383 = vadd.f32 %v345, %v374
        %v384 = vadd.f32 %v346, %v374
        %v385 = vadd.f32 %v347, %v374
        %v386 = vadd.f32 %v348, %v374
        %v387 = vadd.f32 %v349, %v374
        %v388 = vadd.f32 %v350, %v374
        %v389 = vadd.f32 %v351, %v374
        %v390 = vadd.f32 %v352, %v374
        %v391 = vadd.f32 %v353, %v374
        %v392 = vadd.f32 %v354, %v374
        %v393 = vadd.f32 %v355, %v374
        %v394 = vadd.f32 %v356, %v374
        %v395 = vadd.f32 %v357, %v374
        %v396 = vadd.f32 %v358, %v374
        %v397 = vadd.f32 %v359, %v374
        %v398 = vadd.f32 %v360, %v374
        %v399 = vadd.f32 %v361, %v374
        %v400 = vadd.f32 %v362, %v374
        %v401 = vadd.f32 %v363, %v374
        %v402 = vadd.f32 %v364, %v374
        %v403 = vadd.f32 %v365, %v374
        %v404 = vadd.f32 %v366, %v374
        %v405 = vadd.f32 %v367, %v374
        %v406 = vadd.f32 %v368, %v374
        %v407 = vadd.f32 %v369, %v374
        %vm408 = vcmask 31744
        %409 = vst.msk [vmem:[#allocation2] sm:$0xff] %vm408, 0.0
        %410 = vst.msk [vmem:[#allocation2 + $0x8] sm:$0xff] %vm408, 0.0
        %vm411 = vcmask 25600
        %412 = vst.msk [vmem:[#allocation2 + $0x10] sm:$0x3] %vm411, 0.0
        %413 = vst.msk [vmem:[#allocation2 + $0x18] sm:$0xff] %vm408, 0.0
        %414 = vst.msk [vmem:[#allocation2 + $0x20] sm:$0xff] %vm408, 0.0
        %415 = vst.msk [vmem:[#allocation2 + $0x28] sm:$0x3] %vm411, 0.0
        %416 = vst.msk [vmem:[#allocation2 + $0x30] sm:$0xff] %vm408, 0.0
        %417 = vst.msk [vmem:[#allocation2 + $0x38] sm:$0xff] %vm408, 0.0
        %418 = vst.msk [vmem:[#allocation2 + $0x40] sm:$0x3] %vm411, 0.0
        %419 = vst.msk [vmem:[#allocation2 + $0x48] sm:$0xff] %vm408, 0.0
        %420 = vst.msk [vmem:[#allocation2 + $0x50] sm:$0xff] %vm408, 0.0
        %421 = vst.msk [vmem:[#allocation2 + $0x58] sm:$0x3] %vm411, 0.0
        %422 = vst.msk [vmem:[#allocation2 + $0x60] sm:$0xff] %vm408, 0.0
        %423 = vst.msk [vmem:[#allocation2 + $0x68] sm:$0xff] %vm408, 0.0
        %424 = vst.msk [vmem:[#allocation2 + $0x70] sm:$0x3] %vm411, 0.0
        %425 = vst.msk [vmem:[#allocation2 + $0x78] sm:$0xff] %vm408, 0.0
        %426 = vst.msk [vmem:[#allocation2 + $0x80] sm:$0xff] %vm408, 0.0
        %427 = vst.msk [vmem:[#allocation2 + $0x88] sm:$0x3] %vm411, 0.0
        %428 = vst.msk [vmem:[#allocation2 + $0x90] sm:$0xff] %vm408, 0.0
        %429 = vst.msk [vmem:[#allocation2 + $0x98] sm:$0xff] %vm408, 0.0
        %430 = vst.msk [vmem:[#allocation2 + $0xa0] sm:$0x3] %vm411, 0.0
        %431 = vst.msk [vmem:[#allocation2 + $0xa8] sm:$0xff] %vm408, 0.0
        %432 = vst.msk [vmem:[#allocation2 + $0xb0] sm:$0xff] %vm408, 0.0
        %433 = vst.msk [vmem:[#allocation2 + $0xb8] sm:$0x3] %vm411, 0.0
        %434 = vst.msk [vmem:[#allocation2 + $0xc0] sm:$0xff] %vm408, 0.0
        %435 = vst.msk [vmem:[#allocation2 + $0xc8] sm:$0xff] %vm408, 0.0
        %436 = vst.msk [vmem:[#allocation2 + $0xd0] sm:$0x3] %vm411, 0.0
        %437 = vst.msk [vmem:[#allocation2 + $0xd8] sm:$0xff] %vm408, 0.0
        %438 = vst.msk [vmem:[#allocation2 + $0xe0] sm:$0xff] %vm408, 0.0
        %439 = vst.msk [vmem:[#allocation2 + $0xe8] sm:$0x3] %vm411, 0.0
        %440 = vst.msk [vmem:[#allocation2 + $0xf0] sm:$0xff] %vm408, 0.0
        %441 = vst.msk [vmem:[#allocation2 + $0xf8] sm:$0xff] %vm408, 0.0
        %442 = vst.msk [vmem:[#allocation2 + $0x100] sm:$0x3] %vm411, 0.0
        %443 = vst.msk [vmem:[#allocation2 + $0x108] sm:$0xff] %vm408, 0.0
        %444 = vst.msk [vmem:[#allocation2 + $0x110] sm:$0xff] %vm408, 0.0
        %445 = vst.msk [vmem:[#allocation2 + $0x118] sm:$0x3] %vm411, 0.0
        %446 = vst.msk [vmem:[#allocation2 + $0x120] sm:$0xff] %vm408, 0.0
        %447 = vst.msk [vmem:[#allocation2 + $0x128] sm:$0xff] %vm408, 0.0
        %448 = vst.msk [vmem:[#allocation2 + $0x130] sm:$0x3] %vm411, 0.0
        %449 = vst.msk [vmem:[#allocation2 + $0x138] sm:$0xff] %vm408, 0.0
        %450 = vst.msk [vmem:[#allocation2 + $0x140] sm:$0xff] %vm408, 0.0
        %451 = vst.msk [vmem:[#allocation2 + $0x148] sm:$0x3] %vm411, 0.0
        %452 = vst.msk [vmem:[#allocation2 + $0x150] sm:$0xff] %vm408, 0.0
        %453 = vst.msk [vmem:[#allocation2 + $0x158] sm:$0xff] %vm408, 0.0
        %454 = vst.msk [vmem:[#allocation2 + $0x160] sm:$0x3] %vm411, 0.0
        %455 = vst.msk [vmem:[#allocation2 + $0x168] sm:$0xff] %vm408, 0.0
        %456 = vst.msk [vmem:[#allocation2 + $0x170] sm:$0xff] %vm408, 0.0
        %457 = vst.msk [vmem:[#allocation2 + $0x178] sm:$0x3] %vm411, 0.0
        %458 = vst.msk [vmem:[#allocation2 + $0x180] sm:$0xff] %vm408, 0.0
        %459 = vst.msk [vmem:[#allocation2 + $0x188] sm:$0xff] %vm408, 0.0
        %460 = vst.msk [vmem:[#allocation2 + $0x190] sm:$0x3] %vm411, 0.0
        %461 = vst.msk [vmem:[#allocation2 + $0x198] sm:$0xff] %vm408, 0.0
        %462 = vst.msk [vmem:[#allocation2 + $0x1a0] sm:$0xff] %vm408, 0.0
        %463 = vst.msk [vmem:[#allocation2 + $0x1a8] sm:$0x3] %vm411, 0.0
        %s464 = scalar_lea.vmem [#allocation2], 24
        %465 = vst.msk [vmem:[%s464 + $0x1] sm:$0xff] %vm408, %v376
        %466 = vst.msk [vmem:[%s464 + $0x9] sm:$0xff] %vm408, %v377
        %467 = vst.msk [vmem:[%s464 + $0x19] sm:$0xff] %vm408, %v378
        %468 = vst.msk [vmem:[%s464 + $0x21] sm:$0xff] %vm408, %v379
        %469 = vst.msk [vmem:[%s464 + $0x31] sm:$0xff] %vm408, %v380
        %470 = vst.msk [vmem:[%s464 + $0x39] sm:$0xff] %vm408, %v381
        %471 = vst.msk [vmem:[%s464 + $0x49] sm:$0xff] %vm408, %v382
        %472 = vst.msk [vmem:[%s464 + $0x51] sm:$0xff] %vm408, %v383
        %473 = vst.msk [vmem:[%s464 + $0x61] sm:$0xff] %vm408, %v384
        %474 = vst.msk [vmem:[%s464 + $0x69] sm:$0xff] %vm408, %v385
        %475 = vst.msk [vmem:[%s464 + $0x79] sm:$0xff] %vm408, %v386
        %476 = vst.msk [vmem:[%s464 + $0x81] sm:$0xff] %vm408, %v387
        %477 = vst.msk [vmem:[%s464 + $0x91] sm:$0xff] %vm408, %v388
        %478 = vst.msk [vmem:[%s464 + $0x99] sm:$0xff] %vm408, %v389
        %479 = vst.msk [vmem:[%s464 + $0xa9] sm:$0xff] %vm408, %v390
        %480 = vst.msk [vmem:[%s464 + $0xb1] sm:$0xff] %vm408, %v391
        %481 = vst.msk [vmem:[%s464 + $0xc1] sm:$0xff] %vm408, %v392
        %482 = vst.msk [vmem:[%s464 + $0xc9] sm:$0xff] %vm408, %v393
        %483 = vst.msk [vmem:[%s464 + $0xd9] sm:$0xff] %vm408, %v394
        %484 = vst.msk [vmem:[%s464 + $0xe1] sm:$0xff] %vm408, %v395
        %485 = vst.msk [vmem:[%s464 + $0xf1] sm:$0xff] %vm408, %v396
        %486 = vst.msk [vmem:[%s464 + $0xf9] sm:$0xff] %vm408, %v397
        %487 = vst.msk [vmem:[%s464 + $0x109] sm:$0xff] %vm408, %v398
        %488 = vst.msk [vmem:[%s464 + $0x111] sm:$0xff] %vm408, %v399
        %489 = vst.msk [vmem:[%s464 + $0x121] sm:$0xff] %vm408, %v400
        %490 = vst.msk [vmem:[%s464 + $0x129] sm:$0xff] %vm408, %v401
        %491 = vst.msk [vmem:[%s464 + $0x139] sm:$0xff] %vm408, %v402
        %492 = vst.msk [vmem:[%s464 + $0x141] sm:$0xff] %vm408, %v403
        %493 = vst.msk [vmem:[%s464 + $0x151] sm:$0xff] %vm408, %v404
        %494 = vst.msk [vmem:[%s464 + $0x159] sm:$0xff] %vm408, %v405
        %495 = vst.msk [vmem:[%s464 + $0x169] sm:$0xff] %vm408, %v406
        %496 = vst.msk [vmem:[%s464 + $0x171] sm:$0xff] %vm408, %v407
        %v497 = vld [vmem:[#allocation2] sm:$0xff]
        %v498 = vld [vmem:[#allocation2 + $0x8] sm:$0xff]
        %v499 = vld [vmem:[#allocation2 + $0x18] sm:$0xff]
        %v500 = vld [vmem:[#allocation2 + $0x20] sm:$0xff]
        %v501 = vld [vmem:[#allocation2 + $0x30] sm:$0xff]
        %v502 = vld [vmem:[#allocation2 + $0x38] sm:$0xff]
        %v503 = vld [vmem:[#allocation2 + $0x48] sm:$0xff]
        %v504 = vld [vmem:[#allocation2 + $0x50] sm:$0xff]
        %v505 = vld [vmem:[#allocation2 + $0x60] sm:$0xff]
        %v506 = vld [vmem:[#allocation2 + $0x68] sm:$0xff]
        %v507 = vld [vmem:[#allocation2 + $0x78] sm:$0xff]
        %v508 = vld [vmem:[#allocation2 + $0x80] sm:$0xff]
        %v509 = vld [vmem:[#allocation2 + $0x90] sm:$0xff]
        %v510 = vld [vmem:[#allocation2 + $0x98] sm:$0xff]
        %v511 = vld [vmem:[#allocation2 + $0xa8] sm:$0xff]
        %v512 = vld [vmem:[#allocation2 + $0xb0] sm:$0xff]
        %v513 = vld [vmem:[#allocation2 + $0xc0] sm:$0xff]
        %v514 = vld [vmem:[#allocation2 + $0xc8] sm:$0xff]
        %v515 = vld [vmem:[#allocation2 + $0xd8] sm:$0xff]
        %v516 = vld [vmem:[#allocation2 + $0xe0] sm:$0xff]
        %v517 = vld [vmem:[#allocation2 + $0xf0] sm:$0xff]
        %v518 = vld [vmem:[#allocation2 + $0xf8] sm:$0xff]
        %v519 = vld [vmem:[#allocation2 + $0x108] sm:$0xff]
        %v520 = vld [vmem:[#allocation2 + $0x110] sm:$0xff]
        %v521 = vld [vmem:[#allocation2 + $0x120] sm:$0xff]
        %v522 = vld [vmem:[#allocation2 + $0x128] sm:$0xff]
        %v523 = vld [vmem:[#allocation2 + $0x138] sm:$0xff]
        %v524 = vld [vmem:[#allocation2 + $0x140] sm:$0xff]
        %v525 = vld [vmem:[#allocation2 + $0x150] sm:$0xff]
        %v526 = vld [vmem:[#allocation2 + $0x158] sm:$0xff]
        %v527 = vld [vmem:[#allocation2 + $0x168] sm:$0xff]
        %v528 = vld [vmem:[#allocation2 + $0x170] sm:$0xff]
        %v529 = vld [vmem:[#allocation2 + $0x1] sm:$0xff]
        %v530 = vld [vmem:[#allocation2 + $0x9] sm:$0xff]
        %v531 = vld [vmem:[#allocation2 + $0x19] sm:$0xff]
        %v532 = vld [vmem:[#allocation2 + $0x21] sm:$0xff]
        %v533 = vld [vmem:[#allocation2 + $0x31] sm:$0xff]
        %v534 = vld [vmem:[#allocation2 + $0x39] sm:$0xff]
        %v535 = vld [vmem:[#allocation2 + $0x49] sm:$0xff]
        %v536 = vld [vmem:[#allocation2 + $0x51] sm:$0xff]
        %v537 = vld [vmem:[#allocation2 + $0x61] sm:$0xff]
        %v538 = vld [vmem:[#allocation2 + $0x69] sm:$0xff]
        %v539 = vld [vmem:[#allocation2 + $0x79] sm:$0xff]
        %v540 = vld [vmem:[#allocation2 + $0x81] sm:$0xff]
        %v541 = vld [vmem:[#allocation2 + $0x91] sm:$0xff]
        %v542 = vld [vmem:[#allocation2 + $0x99] sm:$0xff]
        %v543 = vld [vmem:[#allocation2 + $0xa9] sm:$0xff]
        %v544 = vld [vmem:[#allocation2 + $0xb1] sm:$0xff]
        %v545 = vld [vmem:[#allocation2 + $0xc1] sm:$0xff]
        %v546 = vld [vmem:[#allocation2 + $0xc9] sm:$0xff]
        %v547 = vld [vmem:[#allocation2 + $0xd9] sm:$0xff]
        %v548 = vld [vmem:[#allocation2 + $0xe1] sm:$0xff]
        %v549 = vld [vmem:[#allocation2 + $0xf1] sm:$0xff]
        %v550 = vld [vmem:[#allocation2 + $0xf9] sm:$0xff]
        %v551 = vld [vmem:[#allocation2 + $0x109] sm:$0xff]
        %v552 = vld [vmem:[#allocation2 + $0x111] sm:$0xff]
        %v553 = vld [vmem:[#allocation2 + $0x121] sm:$0xff]
        %v554 = vld [vmem:[#allocation2 + $0x129] sm:$0xff]
        %v555 = vld [vmem:[#allocation2 + $0x139] sm:$0xff]
        %v556 = vld [vmem:[#allocation2 + $0x141] sm:$0xff]
        %v557 = vld [vmem:[#allocation2 + $0x151] sm:$0xff]
        %v558 = vld [vmem:[#allocation2 + $0x159] sm:$0xff]
        %v559 = vld [vmem:[#allocation2 + $0x169] sm:$0xff]
        %v560 = vld [vmem:[#allocation2 + $0x171] sm:$0xff]
        %v561 = vld [vmem:[#allocation2 + $0x2] sm:$0xff]
        %v562 = vld [vmem:[#allocation2 + $0xa] sm:$0xff]
        %v563 = vld [vmem:[#allocation2 + $0x1a] sm:$0xff]
        %v564 = vld [vmem:[#allocation2 + $0x22] sm:$0xff]
        %v565 = vld [vmem:[#allocation2 + $0x32] sm:$0xff]
        %v566 = vld [vmem:[#allocation2 + $0x3a] sm:$0xff]
        %v567 = vld [vmem:[#allocation2 + $0x4a] sm:$0xff]
        %v568 = vld [vmem:[#allocation2 + $0x52] sm:$0xff]
        %v569 = vld [vmem:[#allocation2 + $0x62] sm:$0xff]
        %v570 = vld [vmem:[#allocation2 + $0x6a] sm:$0xff]
        %v571 = vld [vmem:[#allocation2 + $0x7a] sm:$0xff]
        %v572 = vld [vmem:[#allocation2 + $0x82] sm:$0xff]
        %v573 = vld [vmem:[#allocation2 + $0x92] sm:$0xff]
        %v574 = vld [vmem:[#allocation2 + $0x9a] sm:$0xff]
        %v575 = vld [vmem:[#allocation2 + $0xaa] sm:$0xff]
        %v576 = vld [vmem:[#allocation2 + $0xb2] sm:$0xff]
        %v577 = vld [vmem:[#allocation2 + $0xc2] sm:$0xff]
        %v578 = vld [vmem:[#allocation2 + $0xca] sm:$0xff]
        %v579 = vld [vmem:[#allocation2 + $0xda] sm:$0xff]
        %v580 = vld [vmem:[#allocation2 + $0xe2] sm:$0xff]
        %v581 = vld [vmem:[#allocation2 + $0xf2] sm:$0xff]
        %v582 = vld [vmem:[#allocation2 + $0xfa] sm:$0xff]
        %v583 = vld [vmem:[#allocation2 + $0x10a] sm:$0xff]
        %v584 = vld [vmem:[#allocation2 + $0x112] sm:$0xff]
        %v585 = vld [vmem:[#allocation2 + $0x122] sm:$0xff]
        %v586 = vld [vmem:[#allocation2 + $0x12a] sm:$0xff]
        %v587 = vld [vmem:[#allocation2 + $0x13a] sm:$0xff]
        %v588 = vld [vmem:[#allocation2 + $0x142] sm:$0xff]
        %v589 = vld [vmem:[#allocation2 + $0x152] sm:$0xff]
        %v590 = vld [vmem:[#allocation2 + $0x15a] sm:$0xff]
        %v591 = vld [vmem:[#allocation2 + $0x16a] sm:$0xff]
        %v592 = vld [vmem:[#allocation2 + $0x172] sm:$0xff]
        %v593 = vld [vmem:[%s464] sm:$0xff]
        %v594 = vld [vmem:[%s464 + $0x8] sm:$0xff]
        %v595 = vld [vmem:[%s464 + $0x18] sm:$0xff]
        %v596 = vld [vmem:[%s464 + $0x20] sm:$0xff]
        %v597 = vld [vmem:[%s464 + $0x30] sm:$0xff]
        %v598 = vld [vmem:[%s464 + $0x38] sm:$0xff]
        %v599 = vld [vmem:[%s464 + $0x48] sm:$0xff]
        %v600 = vld [vmem:[%s464 + $0x50] sm:$0xff]
        %v601 = vld [vmem:[%s464 + $0x60] sm:$0xff]
        %v602 = vld [vmem:[%s464 + $0x68] sm:$0xff]
        %v603 = vld [vmem:[%s464 + $0x78] sm:$0xff]
        %v604 = vld [vmem:[%s464 + $0x80] sm:$0xff]
        %v605 = vld [vmem:[%s464 + $0x90] sm:$0xff]
        %v606 = vld [vmem:[%s464 + $0x98] sm:$0xff]
        %v607 = vld [vmem:[%s464 + $0xa8] sm:$0xff]
        %v608 = vld [vmem:[%s464 + $0xb0] sm:$0xff]
        %v609 = vld [vmem:[%s464 + $0xc0] sm:$0xff]
        %v610 = vld [vmem:[%s464 + $0xc8] sm:$0xff]
        %v611 = vld [vmem:[%s464 + $0xd8] sm:$0xff]
        %v612 = vld [vmem:[%s464 + $0xe0] sm:$0xff]
        %v613 = vld [vmem:[%s464 + $0xf0] sm:$0xff]
        %v614 = vld [vmem:[%s464 + $0xf8] sm:$0xff]
        %v615 = vld [vmem:[%s464 + $0x108] sm:$0xff]
        %v616 = vld [vmem:[%s464 + $0x110] sm:$0xff]
        %v617 = vld [vmem:[%s464 + $0x120] sm:$0xff]
        %v618 = vld [vmem:[%s464 + $0x128] sm:$0xff]
        %v619 = vld [vmem:[%s464 + $0x138] sm:$0xff]
        %v620 = vld [vmem:[%s464 + $0x140] sm:$0xff]
        %v621 = vld [vmem:[%s464 + $0x150] sm:$0xff]
        %v622 = vld [vmem:[%s464 + $0x158] sm:$0xff]
        %v623 = vld [vmem:[%s464 + $0x168] sm:$0xff]
        %v624 = vld [vmem:[%s464 + $0x170] sm:$0xff]
        %v625 = vld [vmem:[%s464 + $0x1] sm:$0xff]
        %v626 = vld [vmem:[%s464 + $0x9] sm:$0xff]
        %v627 = vld [vmem:[%s464 + $0x19] sm:$0xff]
        %v628 = vld [vmem:[%s464 + $0x21] sm:$0xff]
        %v629 = vld [vmem:[%s464 + $0x31] sm:$0xff]
        %v630 = vld [vmem:[%s464 + $0x39] sm:$0xff]
        %v631 = vld [vmem:[%s464 + $0x49] sm:$0xff]
        %v632 = vld [vmem:[%s464 + $0x51] sm:$0xff]
        %v633 = vld [vmem:[%s464 + $0x61] sm:$0xff]
        %v634 = vld [vmem:[%s464 + $0x69] sm:$0xff]
        %v635 = vld [vmem:[%s464 + $0x79] sm:$0xff]
        %v636 = vld [vmem:[%s464 + $0x81] sm:$0xff]
        %v637 = vld [vmem:[%s464 + $0x91] sm:$0xff]
        %v638 = vld [vmem:[%s464 + $0x99] sm:$0xff]
        %v639 = vld [vmem:[%s464 + $0xa9] sm:$0xff]
        %v640 = vld [vmem:[%s464 + $0xb1] sm:$0xff]
        %v641 = vld [vmem:[%s464 + $0xc1] sm:$0xff]
        %v642 = vld [vmem:[%s464 + $0xc9] sm:$0xff]
        %v643 = vld [vmem:[%s464 + $0xd9] sm:$0xff]
        %v644 = vld [vmem:[%s464 + $0xe1] sm:$0xff]
        %v645 = vld [vmem:[%s464 + $0xf1] sm:$0xff]
        %v646 = vld [vmem:[%s464 + $0xf9] sm:$0xff]
        %v647 = vld [vmem:[%s464 + $0x109] sm:$0xff]
        %v648 = vld [vmem:[%s464 + $0x111] sm:$0xff]
        %v649 = vld [vmem:[%s464 + $0x121] sm:$0xff]
        %v650 = vld [vmem:[%s464 + $0x129] sm:$0xff]
        %v651 = vld [vmem:[%s464 + $0x139] sm:$0xff]
        %v652 = vld [vmem:[%s464 + $0x141] sm:$0xff]
        %v653 = vld [vmem:[%s464 + $0x151] sm:$0xff]
        %v654 = vld [vmem:[%s464 + $0x159] sm:$0xff]
        %v655 = vld [vmem:[%s464 + $0x169] sm:$0xff]
        %v656 = vld [vmem:[%s464 + $0x171] sm:$0xff]
        %v657 = vld [vmem:[%s464 + $0x2] sm:$0xff]
        %v658 = vld [vmem:[%s464 + $0xa] sm:$0xff]
        %v659 = vld [vmem:[%s464 + $0x1a] sm:$0xff]
        %v660 = vld [vmem:[%s464 + $0x22] sm:$0xff]
        %v661 = vld [vmem:[%s464 + $0x32] sm:$0xff]
        %v662 = vld [vmem:[%s464 + $0x3a] sm:$0xff]
        %v663 = vld [vmem:[%s464 + $0x4a] sm:$0xff]
        %v664 = vld [vmem:[%s464 + $0x52] sm:$0xff]
        %v665 = vld [vmem:[%s464 + $0x62] sm:$0xff]
        %v666 = vld [vmem:[%s464 + $0x6a] sm:$0xff]
        %v667 = vld [vmem:[%s464 + $0x7a] sm:$0xff]
        %v668 = vld [vmem:[%s464 + $0x82] sm:$0xff]
        %v669 = vld [vmem:[%s464 + $0x92] sm:$0xff]
        %v670 = vld [vmem:[%s464 + $0x9a] sm:$0xff]
        %v671 = vld [vmem:[%s464 + $0xaa] sm:$0xff]
        %v672 = vld [vmem:[%s464 + $0xb2] sm:$0xff]
        %v673 = vld [vmem:[%s464 + $0xc2] sm:$0xff]
        %v674 = vld [vmem:[%s464 + $0xca] sm:$0xff]
        %v675 = vld [vmem:[%s464 + $0xda] sm:$0xff]
        %v676 = vld [vmem:[%s464 + $0xe2] sm:$0xff]
        %v677 = vld [vmem:[%s464 + $0xf2] sm:$0xff]
        %v678 = vld [vmem:[%s464 + $0xfa] sm:$0xff]
        %v679 = vld [vmem:[%s464 + $0x10a] sm:$0xff]
        %v680 = vld [vmem:[%s464 + $0x112] sm:$0xff]
        %v681 = vld [vmem:[%s464 + $0x122] sm:$0xff]
        %v682 = vld [vmem:[%s464 + $0x12a] sm:$0xff]
        %v683 = vld [vmem:[%s464 + $0x13a] sm:$0xff]
        %v684 = vld [vmem:[%s464 + $0x142] sm:$0xff]
        %v685 = vld [vmem:[%s464 + $0x152] sm:$0xff]
        %v686 = vld [vmem:[%s464 + $0x15a] sm:$0xff]
        %v687 = vld [vmem:[%s464 + $0x16a] sm:$0xff]
        %v688 = vld [vmem:[%s464 + $0x172] sm:$0xff]
        %s689 = scalar_lea.vmem [#allocation2], 48
        %v690 = vld [vmem:[%s689] sm:$0xff]
        %v691 = vld [vmem:[%s689 + $0x8] sm:$0xff]
        %v692 = vld [vmem:[%s689 + $0x18] sm:$0xff]
        %v693 = vld [vmem:[%s689 + $0x20] sm:$0xff]
        %v694 = vld [vmem:[%s689 + $0x30] sm:$0xff]
        %v695 = vld [vmem:[%s689 + $0x38] sm:$0xff]
        %v696 = vld [vmem:[%s689 + $0x48] sm:$0xff]
        %v697 = vld [vmem:[%s689 + $0x50] sm:$0xff]
        %v698 = vld [vmem:[%s689 + $0x60] sm:$0xff]
        %v699 = vld [vmem:[%s689 + $0x68] sm:$0xff]
        %v700 = vld [vmem:[%s689 + $0x78] sm:$0xff]
        %v701 = vld [vmem:[%s689 + $0x80] sm:$0xff]
        %v702 = vld [vmem:[%s689 + $0x90] sm:$0xff]
        %v703 = vld [vmem:[%s689 + $0x98] sm:$0xff]
        %v704 = vld [vmem:[%s689 + $0xa8] sm:$0xff]
        %v705 = vld [vmem:[%s689 + $0xb0] sm:$0xff]
        %v706 = vld [vmem:[%s689 + $0xc0] sm:$0xff]
        %v707 = vld [vmem:[%s689 + $0xc8] sm:$0xff]
        %v708 = vld [vmem:[%s689 + $0xd8] sm:$0xff]
        %v709 = vld [vmem:[%s689 + $0xe0] sm:$0xff]
        %v710 = vld [vmem:[%s689 + $0xf0] sm:$0xff]
        %v711 = vld [vmem:[%s689 + $0xf8] sm:$0xff]
        %v712 = vld [vmem:[%s689 + $0x108] sm:$0xff]
        %v713 = vld [vmem:[%s689 + $0x110] sm:$0xff]
        %v714 = vld [vmem:[%s689 + $0x120] sm:$0xff]
        %v715 = vld [vmem:[%s689 + $0x128] sm:$0xff]
        %v716 = vld [vmem:[%s689 + $0x138] sm:$0xff]
        %v717 = vld [vmem:[%s689 + $0x140] sm:$0xff]
        %v718 = vld [vmem:[%s689 + $0x150] sm:$0xff]
        %v719 = vld [vmem:[%s689 + $0x158] sm:$0xff]
        %v720 = vld [vmem:[%s689 + $0x168] sm:$0xff]
        %v721 = vld [vmem:[%s689 + $0x170] sm:$0xff]
        %v722 = vld [vmem:[%s689 + $0x1] sm:$0xff]
        %v723 = vld [vmem:[%s689 + $0x9] sm:$0xff]
        %v724 = vld [vmem:[%s689 + $0x19] sm:$0xff]
        %v725 = vld [vmem:[%s689 + $0x21] sm:$0xff]
        %v726 = vld [vmem:[%s689 + $0x31] sm:$0xff]
        %v727 = vld [vmem:[%s689 + $0x39] sm:$0xff]
        %v728 = vld [vmem:[%s689 + $0x49] sm:$0xff]
        %v729 = vld [vmem:[%s689 + $0x51] sm:$0xff]
        %v730 = vld [vmem:[%s689 + $0x61] sm:$0xff]
        %v731 = vld [vmem:[%s689 + $0x69] sm:$0xff]
        %v732 = vld [vmem:[%s689 + $0x79] sm:$0xff]
        %v733 = vld [vmem:[%s689 + $0x81] sm:$0xff]
        %v734 = vld [vmem:[%s689 + $0x91] sm:$0xff]
        %v735 = vld [vmem:[%s689 + $0x99] sm:$0xff]
        %v736 = vld [vmem:[%s689 + $0xa9] sm:$0xff]
        %v737 = vld [vmem:[%s689 + $0xb1] sm:$0xff]
        %v738 = vld [vmem:[%s689 + $0xc1] sm:$0xff]
        %v739 = vld [vmem:[%s689 + $0xc9] sm:$0xff]
        %v740 = vld [vmem:[%s689 + $0xd9] sm:$0xff]
        %v741 = vld [vmem:[%s689 + $0xe1] sm:$0xff]
        %v742 = vld [vmem:[%s689 + $0xf1] sm:$0xff]
        %v743 = vld [vmem:[%s689 + $0xf9] sm:$0xff]
        %v744 = vld [vmem:[%s689 + $0x109] sm:$0xff]
        %v745 = vld [vmem:[%s689 + $0x111] sm:$0xff]
        %v746 = vld [vmem:[%s689 + $0x121] sm:$0xff]
        %v747 = vld [vmem:[%s689 + $0x129] sm:$0xff]
        %v748 = vld [vmem:[%s689 + $0x139] sm:$0xff]
        %v749 = vld [vmem:[%s689 + $0x141] sm:$0xff]
        %v750 = vld [vmem:[%s689 + $0x151] sm:$0xff]
        %v751 = vld [vmem:[%s689 + $0x159] sm:$0xff]
        %v752 = vld [vmem:[%s689 + $0x169] sm:$0xff]
        %v753 = vld [vmem:[%s689 + $0x171] sm:$0xff]
        %v754 = vld [vmem:[%s689 + $0x2] sm:$0xff]
        %v755 = vld [vmem:[%s689 + $0xa] sm:$0xff]
        %v756 = vld [vmem:[%s689 + $0x1a] sm:$0xff]
        %v757 = vld [vmem:[%s689 + $0x22] sm:$0xff]
        %v758 = vld [vmem:[%s689 + $0x32] sm:$0xff]
        %v759 = vld [vmem:[%s689 + $0x3a] sm:$0xff]
        %v760 = vld [vmem:[%s689 + $0x4a] sm:$0xff]
        %v761 = vld [vmem:[%s689 + $0x52] sm:$0xff]
        %v762 = vld [vmem:[%s689 + $0x62] sm:$0xff]
        %v763 = vld [vmem:[%s689 + $0x6a] sm:$0xff]
        %v764 = vld [vmem:[%s689 + $0x7a] sm:$0xff]
        %v765 = vld [vmem:[%s689 + $0x82] sm:$0xff]
        %v766 = vld [vmem:[%s689 + $0x92] sm:$0xff]
        %v767 = vld [vmem:[%s689 + $0x9a] sm:$0xff]
        %v768 = vld [vmem:[%s689 + $0xaa] sm:$0xff]
        %v769 = vld [vmem:[%s689 + $0xb2] sm:$0xff]
        %v770 = vld [vmem:[%s689 + $0xc2] sm:$0xff]
        %v771 = vld [vmem:[%s689 + $0xca] sm:$0xff]
        %v772 = vld [vmem:[%s689 + $0xda] sm:$0xff]
        %v773 = vld [vmem:[%s689 + $0xe2] sm:$0xff]
        %v774 = vld [vmem:[%s689 + $0xf2] sm:$0xff]
        %v775 = vld [vmem:[%s689 + $0xfa] sm:$0xff]
        %v776 = vld [vmem:[%s689 + $0x10a] sm:$0xff]
        %v777 = vld [vmem:[%s689 + $0x112] sm:$0xff]
        %v778 = vld [vmem:[%s689 + $0x122] sm:$0xff]
        %v779 = vld [vmem:[%s689 + $0x12a] sm:$0xff]
        %v780 = vld [vmem:[%s689 + $0x13a] sm:$0xff]
        %v781 = vld [vmem:[%s689 + $0x142] sm:$0xff]
        %v782 = vld [vmem:[%s689 + $0x152] sm:$0xff]
        %v783 = vld [vmem:[%s689 + $0x15a] sm:$0xff]
        %v784 = vld [vmem:[%s689 + $0x16a] sm:$0xff]
        %v785 = vld [vmem:[%s689 + $0x172] sm:$0xff]
        %818 = vrot.lane.b32.xlu0 %v529, 4
        %v819 = vpop.permute.xlu0 %818
        %820 = vrot.lane.b32.xlu0 %v530, 4
        %v821 = vpop.permute.xlu0 %820
        %822 = vrot.lane.b32.xlu0 %v531, 4
        %v823 = vpop.permute.xlu0 %822
        %824 = vrot.lane.b32.xlu0 %v532, 4
        %v825 = vpop.permute.xlu0 %824
        %826 = vrot.lane.b32.xlu0 %v533, 4
        %v827 = vpop.permute.xlu0 %826
        %828 = vrot.lane.b32.xlu0 %v534, 4
        %v829 = vpop.permute.xlu0 %828
        %830 = vrot.lane.b32.xlu0 %v535, 4
        %v831 = vpop.permute.xlu0 %830
        %832 = vrot.lane.b32.xlu0 %v536, 4
        %v833 = vpop.permute.xlu0 %832
        %834 = vrot.lane.b32.xlu0 %v537, 4
        %v835 = vpop.permute.xlu0 %834
        %836 = vrot.lane.b32.xlu0 %v538, 4
        %v837 = vpop.permute.xlu0 %836
        %838 = vrot.lane.b32.xlu0 %v539, 4
        %v839 = vpop.permute.xlu0 %838
        %840 = vrot.lane.b32.xlu0 %v540, 4
        %v841 = vpop.permute.xlu0 %840
        %842 = vrot.lane.b32.xlu0 %v541, 4
        %v843 = vpop.permute.xlu0 %842
        %844 = vrot.lane.b32.xlu0 %v542, 4
        %v845 = vpop.permute.xlu0 %844
        %846 = vrot.lane.b32.xlu0 %v543, 4
        %v847 = vpop.permute.xlu0 %846
        %848 = vrot.lane.b32.xlu0 %v544, 4
        %v849 = vpop.permute.xlu0 %848
        %850 = vrot.lane.b32.xlu0 %v545, 4
        %v851 = vpop.permute.xlu0 %850
        %852 = vrot.lane.b32.xlu0 %v546, 4
        %v853 = vpop.permute.xlu0 %852
        %854 = vrot.lane.b32.xlu0 %v547, 4
        %v855 = vpop.permute.xlu0 %854
        %856 = vrot.lane.b32.xlu0 %v548, 4
        %v857 = vpop.permute.xlu0 %856
        %858 = vrot.lane.b32.xlu0 %v549, 4
        %v859 = vpop.permute.xlu0 %858
        %860 = vrot.lane.b32.xlu0 %v550, 4
        %v861 = vpop.permute.xlu0 %860
        %862 = vrot.lane.b32.xlu0 %v551, 4
        %v863 = vpop.permute.xlu0 %862
        %864 = vrot.lane.b32.xlu0 %v552, 4
        %v865 = vpop.permute.xlu0 %864
        %866 = vrot.lane.b32.xlu0 %v553, 4
        %v867 = vpop.permute.xlu0 %866
        %868 = vrot.lane.b32.xlu0 %v554, 4
        %v869 = vpop.permute.xlu0 %868
        %870 = vrot.lane.b32.xlu0 %v555, 4
        %v871 = vpop.permute.xlu0 %870
        %872 = vrot.lane.b32.xlu0 %v556, 4
        %v873 = vpop.permute.xlu0 %872
        %874 = vrot.lane.b32.xlu0 %v557, 4
        %v875 = vpop.permute.xlu0 %874
        %876 = vrot.lane.b32.xlu0 %v558, 4
        %v877 = vpop.permute.xlu0 %876
        %878 = vrot.lane.b32.xlu0 %v559, 4
        %v879 = vpop.permute.xlu0 %878
        %880 = vrot.lane.b32.xlu0 %v560, 4
        %v881 = vpop.permute.xlu0 %880
        %946 = vrot.lane.b32.xlu0 %v561, 8
        %v947 = vpop.permute.xlu0 %946
        %948 = vrot.lane.b32.xlu0 %v562, 8
        %v949 = vpop.permute.xlu0 %948
        %950 = vrot.lane.b32.xlu0 %v563, 8
        %v951 = vpop.permute.xlu0 %950
        %952 = vrot.lane.b32.xlu0 %v564, 8
        %v953 = vpop.permute.xlu0 %952
        %954 = vrot.lane.b32.xlu0 %v565, 8
        %v955 = vpop.permute.xlu0 %954
        %956 = vrot.lane.b32.xlu0 %v566, 8
        %v957 = vpop.permute.xlu0 %956
        %958 = vrot.lane.b32.xlu0 %v567, 8
        %v959 = vpop.permute.xlu0 %958
        %960 = vrot.lane.b32.xlu0 %v568, 8
        %v961 = vpop.permute.xlu0 %960
        %962 = vrot.lane.b32.xlu0 %v569, 8
        %v963 = vpop.permute.xlu0 %962
        %964 = vrot.lane.b32.xlu0 %v570, 8
        %v965 = vpop.permute.xlu0 %964
        %966 = vrot.lane.b32.xlu0 %v571, 8
        %v967 = vpop.permute.xlu0 %966
        %968 = vrot.lane.b32.xlu0 %v572, 8
        %v969 = vpop.permute.xlu0 %968
        %970 = vrot.lane.b32.xlu0 %v573, 8
        %v971 = vpop.permute.xlu0 %970
        %972 = vrot.lane.b32.xlu0 %v574, 8
        %v973 = vpop.permute.xlu0 %972
        %974 = vrot.lane.b32.xlu0 %v575, 8
        %v975 = vpop.permute.xlu0 %974
        %976 = vrot.lane.b32.xlu0 %v576, 8
        %v977 = vpop.permute.xlu0 %976
        %978 = vrot.lane.b32.xlu0 %v577, 8
        %v979 = vpop.permute.xlu0 %978
        %980 = vrot.lane.b32.xlu0 %v578, 8
        %v981 = vpop.permute.xlu0 %980
        %982 = vrot.lane.b32.xlu0 %v579, 8
        %v983 = vpop.permute.xlu0 %982
        %984 = vrot.lane.b32.xlu0 %v580, 8
        %v985 = vpop.permute.xlu0 %984
        %986 = vrot.lane.b32.xlu0 %v581, 8
        %v987 = vpop.permute.xlu0 %986
        %988 = vrot.lane.b32.xlu0 %v582, 8
        %v989 = vpop.permute.xlu0 %988
        %990 = vrot.lane.b32.xlu0 %v583, 8
        %v991 = vpop.permute.xlu0 %990
        %992 = vrot.lane.b32.xlu0 %v584, 8
        %v993 = vpop.permute.xlu0 %992
        %994 = vrot.lane.b32.xlu0 %v585, 8
        %v995 = vpop.permute.xlu0 %994
        %996 = vrot.lane.b32.xlu0 %v586, 8
        %v997 = vpop.permute.xlu0 %996
        %998 = vrot.lane.b32.xlu0 %v587, 8
        %v999 = vpop.permute.xlu0 %998
        %1000 = vrot.lane.b32.xlu0 %v588, 8
        %v1001 = vpop.permute.xlu0 %1000
        %1002 = vrot.lane.b32.xlu0 %v589, 8
        %v1003 = vpop.permute.xlu0 %1002
        %1004 = vrot.lane.b32.xlu0 %v590, 8
        %v1005 = vpop.permute.xlu0 %1004
        %1006 = vrot.lane.b32.xlu0 %v591, 8
        %v1007 = vpop.permute.xlu0 %1006
        %1008 = vrot.lane.b32.xlu0 %v592, 8
        %v1009 = vpop.permute.xlu0 %1008
        %1074 = vrot.lane.b32.xlu0 %v593, 12
        %v1075 = vpop.permute.xlu0 %1074
        %1076 = vrot.lane.b32.xlu0 %v594, 12
        %v1077 = vpop.permute.xlu0 %1076
        %1078 = vrot.lane.b32.xlu0 %v595, 12
        %v1079 = vpop.permute.xlu0 %1078
        %1080 = vrot.lane.b32.xlu0 %v596, 12
        %v1081 = vpop.permute.xlu0 %1080
        %1082 = vrot.lane.b32.xlu0 %v597, 12
        %v1083 = vpop.permute.xlu0 %1082
        %1084 = vrot.lane.b32.xlu0 %v598, 12
        %v1085 = vpop.permute.xlu0 %1084
        %1086 = vrot.lane.b32.xlu0 %v599, 12
        %v1087 = vpop.permute.xlu0 %1086
        %1088 = vrot.lane.b32.xlu0 %v600, 12
        %v1089 = vpop.permute.xlu0 %1088
        %1090 = vrot.lane.b32.xlu0 %v601, 12
        %v1091 = vpop.permute.xlu0 %1090
        %1092 = vrot.lane.b32.xlu0 %v602, 12
        %v1093 = vpop.permute.xlu0 %1092
        %1094 = vrot.lane.b32.xlu0 %v603, 12
        %v1095 = vpop.permute.xlu0 %1094
        %1096 = vrot.lane.b32.xlu0 %v604, 12
        %v1097 = vpop.permute.xlu0 %1096
        %1098 = vrot.lane.b32.xlu0 %v605, 12
        %v1099 = vpop.permute.xlu0 %1098
        %1100 = vrot.lane.b32.xlu0 %v606, 12
        %v1101 = vpop.permute.xlu0 %1100
        %1102 = vrot.lane.b32.xlu0 %v607, 12
        %v1103 = vpop.permute.xlu0 %1102
        %1104 = vrot.lane.b32.xlu0 %v608, 12
        %v1105 = vpop.permute.xlu0 %1104
        %1106 = vrot.lane.b32.xlu0 %v609, 12
        %v1107 = vpop.permute.xlu0 %1106
        %1108 = vrot.lane.b32.xlu0 %v610, 12
        %v1109 = vpop.permute.xlu0 %1108
        %1110 = vrot.lane.b32.xlu0 %v611, 12
        %v1111 = vpop.permute.xlu0 %1110
        %1112 = vrot.lane.b32.xlu0 %v612, 12
        %v1113 = vpop.permute.xlu0 %1112
        %1114 = vrot.lane.b32.xlu0 %v613, 12
        %v1115 = vpop.permute.xlu0 %1114
        %1116 = vrot.lane.b32.xlu0 %v614, 12
        %v1117 = vpop.permute.xlu0 %1116
        %1118 = vrot.lane.b32.xlu0 %v615, 12
        %v1119 = vpop.permute.xlu0 %1118
        %1120 = vrot.lane.b32.xlu0 %v616, 12
        %v1121 = vpop.permute.xlu0 %1120
        %1122 = vrot.lane.b32.xlu0 %v617, 12
        %v1123 = vpop.permute.xlu0 %1122
        %1124 = vrot.lane.b32.xlu0 %v618, 12
        %v1125 = vpop.permute.xlu0 %1124
        %1126 = vrot.lane.b32.xlu0 %v619, 12
        %v1127 = vpop.permute.xlu0 %1126
        %1128 = vrot.lane.b32.xlu0 %v620, 12
        %v1129 = vpop.permute.xlu0 %1128
        %1130 = vrot.lane.b32.xlu0 %v621, 12
        %v1131 = vpop.permute.xlu0 %1130
        %1132 = vrot.lane.b32.xlu0 %v622, 12
        %v1133 = vpop.permute.xlu0 %1132
        %1134 = vrot.lane.b32.xlu0 %v623, 12
        %v1135 = vpop.permute.xlu0 %1134
        %1136 = vrot.lane.b32.xlu0 %v624, 12
        %v1137 = vpop.permute.xlu0 %1136
        %1202 = vrot.lane.b32.xlu0 %v625, 16
        %v1203 = vpop.permute.xlu0 %1202
        %1204 = vrot.lane.b32.xlu0 %v626, 16
        %v1205 = vpop.permute.xlu0 %1204
        %1206 = vrot.lane.b32.xlu0 %v627, 16
        %v1207 = vpop.permute.xlu0 %1206
        %1208 = vrot.lane.b32.xlu0 %v628, 16
        %v1209 = vpop.permute.xlu0 %1208
        %1210 = vrot.lane.b32.xlu0 %v629, 16
        %v1211 = vpop.permute.xlu0 %1210
        %1212 = vrot.lane.b32.xlu0 %v630, 16
        %v1213 = vpop.permute.xlu0 %1212
        %1214 = vrot.lane.b32.xlu0 %v631, 16
        %v1215 = vpop.permute.xlu0 %1214
        %1216 = vrot.lane.b32.xlu0 %v632, 16
        %v1217 = vpop.permute.xlu0 %1216
        %1218 = vrot.lane.b32.xlu0 %v633, 16
        %v1219 = vpop.permute.xlu0 %1218
        %1220 = vrot.lane.b32.xlu0 %v634, 16
        %v1221 = vpop.permute.xlu0 %1220
        %1222 = vrot.lane.b32.xlu0 %v635, 16
        %v1223 = vpop.permute.xlu0 %1222
        %1224 = vrot.lane.b32.xlu0 %v636, 16
        %v1225 = vpop.permute.xlu0 %1224
        %1226 = vrot.lane.b32.xlu0 %v637, 16
        %v1227 = vpop.permute.xlu0 %1226
        %1228 = vrot.lane.b32.xlu0 %v638, 16
        %v1229 = vpop.permute.xlu0 %1228
        %1230 = vrot.lane.b32.xlu0 %v639, 16
        %v1231 = vpop.permute.xlu0 %1230
        %1232 = vrot.lane.b32.xlu0 %v640, 16
        %v1233 = vpop.permute.xlu0 %1232
        %1234 = vrot.lane.b32.xlu0 %v641, 16
        %v1235 = vpop.permute.xlu0 %1234
        %1236 = vrot.lane.b32.xlu0 %v642, 16
        %v1237 = vpop.permute.xlu0 %1236
        %1238 = vrot.lane.b32.xlu0 %v643, 16
        %v1239 = vpop.permute.xlu0 %1238
        %1240 = vrot.lane.b32.xlu0 %v644, 16
        %v1241 = vpop.permute.xlu0 %1240
        %1242 = vrot.lane.b32.xlu0 %v645, 16
        %v1243 = vpop.permute.xlu0 %1242
        %1244 = vrot.lane.b32.xlu0 %v646, 16
        %v1245 = vpop.permute.xlu0 %1244
        %1246 = vrot.lane.b32.xlu0 %v647, 16
        %v1247 = vpop.permute.xlu0 %1246
        %1248 = vrot.lane.b32.xlu0 %v648, 16
        %v1249 = vpop.permute.xlu0 %1248
        %1250 = vrot.lane.b32.xlu0 %v649, 16
        %v1251 = vpop.permute.xlu0 %1250
        %1252 = vrot.lane.b32.xlu0 %v650, 16
        %v1253 = vpop.permute.xlu0 %1252
        %1254 = vrot.lane.b32.xlu0 %v651, 16
        %v1255 = vpop.permute.xlu0 %1254
        %1256 = vrot.lane.b32.xlu0 %v652, 16
        %v1257 = vpop.permute.xlu0 %1256
        %1258 = vrot.lane.b32.xlu0 %v653, 16
        %v1259 = vpop.permute.xlu0 %1258
        %1260 = vrot.lane.b32.xlu0 %v654, 16
        %v1261 = vpop.permute.xlu0 %1260
        %1262 = vrot.lane.b32.xlu0 %v655, 16
        %v1263 = vpop.permute.xlu0 %1262
        %1264 = vrot.lane.b32.xlu0 %v656, 16
        %v1265 = vpop.permute.xlu0 %1264
        %1330 = vrot.lane.b32.xlu0 %v657, 20
        %v1331 = vpop.permute.xlu0 %1330
        %1332 = vrot.lane.b32.xlu0 %v658, 20
        %v1333 = vpop.permute.xlu0 %1332
        %1334 = vrot.lane.b32.xlu0 %v659, 20
        %v1335 = vpop.permute.xlu0 %1334
        %1336 = vrot.lane.b32.xlu0 %v660, 20
        %v1337 = vpop.permute.xlu0 %1336
        %1338 = vrot.lane.b32.xlu0 %v661, 20
        %v1339 = vpop.permute.xlu0 %1338
        %1340 = vrot.lane.b32.xlu0 %v662, 20
        %v1341 = vpop.permute.xlu0 %1340
        %1342 = vrot.lane.b32.xlu0 %v663, 20
        %v1343 = vpop.permute.xlu0 %1342
        %1344 = vrot.lane.b32.xlu0 %v664, 20
        %v1345 = vpop.permute.xlu0 %1344
        %1346 = vrot.lane.b32.xlu0 %v665, 20
        %v1347 = vpop.permute.xlu0 %1346
        %1348 = vrot.lane.b32.xlu0 %v666, 20
        %v1349 = vpop.permute.xlu0 %1348
        %1350 = vrot.lane.b32.xlu0 %v667, 20
        %v1351 = vpop.permute.xlu0 %1350
        %1352 = vrot.lane.b32.xlu0 %v668, 20
        %v1353 = vpop.permute.xlu0 %1352
        %1354 = vrot.lane.b32.xlu0 %v669, 20
        %v1355 = vpop.permute.xlu0 %1354
        %1356 = vrot.lane.b32.xlu0 %v670, 20
        %v1357 = vpop.permute.xlu0 %1356
        %1358 = vrot.lane.b32.xlu0 %v671, 20
        %v1359 = vpop.permute.xlu0 %1358
        %1360 = vrot.lane.b32.xlu0 %v672, 20
        %v1361 = vpop.permute.xlu0 %1360
        %1362 = vrot.lane.b32.xlu0 %v673, 20
        %v1363 = vpop.permute.xlu0 %1362
        %1364 = vrot.lane.b32.xlu0 %v674, 20
        %v1365 = vpop.permute.xlu0 %1364
        %1366 = vrot.lane.b32.xlu0 %v675, 20
        %v1367 = vpop.permute.xlu0 %1366
        %1368 = vrot.lane.b32.xlu0 %v676, 20
        %v1369 = vpop.permute.xlu0 %1368
        %1370 = vrot.lane.b32.xlu0 %v677, 20
        %v1371 = vpop.permute.xlu0 %1370
        %1372 = vrot.lane.b32.xlu0 %v678, 20
        %v1373 = vpop.permute.xlu0 %1372
        %1374 = vrot.lane.b32.xlu0 %v679, 20
        %v1375 = vpop.permute.xlu0 %1374
        %1376 = vrot.lane.b32.xlu0 %v680, 20
        %v1377 = vpop.permute.xlu0 %1376
        %1378 = vrot.lane.b32.xlu0 %v681, 20
        %v1379 = vpop.permute.xlu0 %1378
        %1380 = vrot.lane.b32.xlu0 %v682, 20
        %v1381 = vpop.permute.xlu0 %1380
        %1382 = vrot.lane.b32.xlu0 %v683, 20
        %v1383 = vpop.permute.xlu0 %1382
        %1384 = vrot.lane.b32.xlu0 %v684, 20
        %v1385 = vpop.permute.xlu0 %1384
        %1386 = vrot.lane.b32.xlu0 %v685, 20
        %v1387 = vpop.permute.xlu0 %1386
        %1388 = vrot.lane.b32.xlu0 %v686, 20
        %v1389 = vpop.permute.xlu0 %1388
        %1390 = vrot.lane.b32.xlu0 %v687, 20
        %v1391 = vpop.permute.xlu0 %1390
        %1392 = vrot.lane.b32.xlu0 %v688, 20
        %v1393 = vpop.permute.xlu0 %1392
        %1458 = vrot.lane.b32.xlu0 %v690, 24
        %v1459 = vpop.permute.xlu0 %1458
        %1460 = vrot.lane.b32.xlu0 %v691, 24
        %v1461 = vpop.permute.xlu0 %1460
        %1462 = vrot.lane.b32.xlu0 %v692, 24
        %v1463 = vpop.permute.xlu0 %1462
        %1464 = vrot.lane.b32.xlu0 %v693, 24
        %v1465 = vpop.permute.xlu0 %1464
        %1466 = vrot.lane.b32.xlu0 %v694, 24
        %v1467 = vpop.permute.xlu0 %1466
        %1468 = vrot.lane.b32.xlu0 %v695, 24
        %v1469 = vpop.permute.xlu0 %1468
        %1470 = vrot.lane.b32.xlu0 %v696, 24
        %v1471 = vpop.permute.xlu0 %1470
        %1472 = vrot.lane.b32.xlu0 %v697, 24
        %v1473 = vpop.permute.xlu0 %1472
        %1474 = vrot.lane.b32.xlu0 %v698, 24
        %v1475 = vpop.permute.xlu0 %1474
        %1476 = vrot.lane.b32.xlu0 %v699, 24
        %v1477 = vpop.permute.xlu0 %1476
        %1478 = vrot.lane.b32.xlu0 %v700, 24
        %v1479 = vpop.permute.xlu0 %1478
        %1480 = vrot.lane.b32.xlu0 %v701, 24
        %v1481 = vpop.permute.xlu0 %1480
        %1482 = vrot.lane.b32.xlu0 %v702, 24
        %v1483 = vpop.permute.xlu0 %1482
        %1484 = vrot.lane.b32.xlu0 %v703, 24
        %v1485 = vpop.permute.xlu0 %1484
        %1486 = vrot.lane.b32.xlu0 %v704, 24
        %v1487 = vpop.permute.xlu0 %1486
        %1488 = vrot.lane.b32.xlu0 %v705, 24
        %v1489 = vpop.permute.xlu0 %1488
        %1490 = vrot.lane.b32.xlu0 %v706, 24
        %v1491 = vpop.permute.xlu0 %1490
        %1492 = vrot.lane.b32.xlu0 %v707, 24
        %v1493 = vpop.permute.xlu0 %1492
        %1494 = vrot.lane.b32.xlu0 %v708, 24
        %v1495 = vpop.permute.xlu0 %1494
        %1496 = vrot.lane.b32.xlu0 %v709, 24
        %v1497 = vpop.permute.xlu0 %1496
        %1498 = vrot.lane.b32.xlu0 %v710, 24
        %v1499 = vpop.permute.xlu0 %1498
        %1500 = vrot.lane.b32.xlu0 %v711, 24
        %v1501 = vpop.permute.xlu0 %1500
        %1502 = vrot.lane.b32.xlu0 %v712, 24
        %v1503 = vpop.permute.xlu0 %1502
        %1504 = vrot.lane.b32.xlu0 %v713, 24
        %v1505 = vpop.permute.xlu0 %1504
        %1506 = vrot.lane.b32.xlu0 %v714, 24
        %v1507 = vpop.permute.xlu0 %1506
        %1508 = vrot.lane.b32.xlu0 %v715, 24
        %v1509 = vpop.permute.xlu0 %1508
        %1510 = vrot.lane.b32.xlu0 %v716, 24
        %v1511 = vpop.permute.xlu0 %1510
        %1512 = vrot.lane.b32.xlu0 %v717, 24
        %v1513 = vpop.permute.xlu0 %1512
        %1514 = vrot.lane.b32.xlu0 %v718, 24
        %v1515 = vpop.permute.xlu0 %1514
        %1516 = vrot.lane.b32.xlu0 %v719, 24
        %v1517 = vpop.permute.xlu0 %1516
        %1518 = vrot.lane.b32.xlu0 %v720, 24
        %v1519 = vpop.permute.xlu0 %1518
        %1520 = vrot.lane.b32.xlu0 %v721, 24
        %v1521 = vpop.permute.xlu0 %1520
        %1586 = vrot.lane.b32.xlu0 %v722, 28
        %v1587 = vpop.permute.xlu0 %1586
        %1588 = vrot.lane.b32.xlu0 %v723, 28
        %v1589 = vpop.permute.xlu0 %1588
        %1590 = vrot.lane.b32.xlu0 %v724, 28
        %v1591 = vpop.permute.xlu0 %1590
        %1592 = vrot.lane.b32.xlu0 %v725, 28
        %v1593 = vpop.permute.xlu0 %1592
        %1594 = vrot.lane.b32.xlu0 %v726, 28
        %v1595 = vpop.permute.xlu0 %1594
        %1596 = vrot.lane.b32.xlu0 %v727, 28
        %v1597 = vpop.permute.xlu0 %1596
        %1598 = vrot.lane.b32.xlu0 %v728, 28
        %v1599 = vpop.permute.xlu0 %1598
        %1600 = vrot.lane.b32.xlu0 %v729, 28
        %v1601 = vpop.permute.xlu0 %1600
        %1602 = vrot.lane.b32.xlu0 %v730, 28
        %v1603 = vpop.permute.xlu0 %1602
        %1604 = vrot.lane.b32.xlu0 %v731, 28
        %v1605 = vpop.permute.xlu0 %1604
        %1606 = vrot.lane.b32.xlu0 %v732, 28
        %v1607 = vpop.permute.xlu0 %1606
        %1608 = vrot.lane.b32.xlu0 %v733, 28
        %v1609 = vpop.permute.xlu0 %1608
        %1610 = vrot.lane.b32.xlu0 %v734, 28
        %v1611 = vpop.permute.xlu0 %1610
        %1612 = vrot.lane.b32.xlu0 %v735, 28
        %v1613 = vpop.permute.xlu0 %1612
        %1614 = vrot.lane.b32.xlu0 %v736, 28
        %v1615 = vpop.permute.xlu0 %1614
        %1616 = vrot.lane.b32.xlu0 %v737, 28
        %v1617 = vpop.permute.xlu0 %1616
        %1618 = vrot.lane.b32.xlu0 %v738, 28
        %v1619 = vpop.permute.xlu0 %1618
        %1620 = vrot.lane.b32.xlu0 %v739, 28
        %v1621 = vpop.permute.xlu0 %1620
        %1622 = vrot.lane.b32.xlu0 %v740, 28
        %v1623 = vpop.permute.xlu0 %1622
        %1624 = vrot.lane.b32.xlu0 %v741, 28
        %v1625 = vpop.permute.xlu0 %1624
        %1626 = vrot.lane.b32.xlu0 %v742, 28
        %v1627 = vpop.permute.xlu0 %1626
        %1628 = vrot.lane.b32.xlu0 %v743, 28
        %v1629 = vpop.permute.xlu0 %1628
        %1630 = vrot.lane.b32.xlu0 %v744, 28
        %v1631 = vpop.permute.xlu0 %1630
        %1632 = vrot.lane.b32.xlu0 %v745, 28
        %v1633 = vpop.permute.xlu0 %1632
        %1634 = vrot.lane.b32.xlu0 %v746, 28
        %v1635 = vpop.permute.xlu0 %1634
        %1636 = vrot.lane.b32.xlu0 %v747, 28
        %v1637 = vpop.permute.xlu0 %1636
        %1638 = vrot.lane.b32.xlu0 %v748, 28
        %v1639 = vpop.permute.xlu0 %1638
        %1640 = vrot.lane.b32.xlu0 %v749, 28
        %v1641 = vpop.permute.xlu0 %1640
        %1642 = vrot.lane.b32.xlu0 %v750, 28
        %v1643 = vpop.permute.xlu0 %1642
        %1644 = vrot.lane.b32.xlu0 %v751, 28
        %v1645 = vpop.permute.xlu0 %1644
        %1646 = vrot.lane.b32.xlu0 %v752, 28
        %v1647 = vpop.permute.xlu0 %1646
        %1648 = vrot.lane.b32.xlu0 %v753, 28
        %v1649 = vpop.permute.xlu0 %1648
        %1714 = vrot.lane.b32.xlu0 %v754, 32
        %v1715 = vpop.permute.xlu0 %1714
        %1716 = vrot.lane.b32.xlu0 %v755, 32
        %v1717 = vpop.permute.xlu0 %1716
        %1718 = vrot.lane.b32.xlu0 %v756, 32
        %v1719 = vpop.permute.xlu0 %1718
        %1720 = vrot.lane.b32.xlu0 %v757, 32
        %v1721 = vpop.permute.xlu0 %1720
        %1722 = vrot.lane.b32.xlu0 %v758, 32
        %v1723 = vpop.permute.xlu0 %1722
        %1724 = vrot.lane.b32.xlu0 %v759, 32
        %v1725 = vpop.permute.xlu0 %1724
        %1726 = vrot.lane.b32.xlu0 %v760, 32
        %v1727 = vpop.permute.xlu0 %1726
        %1728 = vrot.lane.b32.xlu0 %v761, 32
        %v1729 = vpop.permute.xlu0 %1728
        %1730 = vrot.lane.b32.xlu0 %v762, 32
        %v1731 = vpop.permute.xlu0 %1730
        %1732 = vrot.lane.b32.xlu0 %v763, 32
        %v1733 = vpop.permute.xlu0 %1732
        %1734 = vrot.lane.b32.xlu0 %v764, 32
        %v1735 = vpop.permute.xlu0 %1734
        %1736 = vrot.lane.b32.xlu0 %v765, 32
        %v1737 = vpop.permute.xlu0 %1736
        %1738 = vrot.lane.b32.xlu0 %v766, 32
        %v1739 = vpop.permute.xlu0 %1738
        %1740 = vrot.lane.b32.xlu0 %v767, 32
        %v1741 = vpop.permute.xlu0 %1740
        %1742 = vrot.lane.b32.xlu0 %v768, 32
        %v1743 = vpop.permute.xlu0 %1742
        %1744 = vrot.lane.b32.xlu0 %v769, 32
        %v1745 = vpop.permute.xlu0 %1744
        %1746 = vrot.lane.b32.xlu0 %v770, 32
        %v1747 = vpop.permute.xlu0 %1746
        %1748 = vrot.lane.b32.xlu0 %v771, 32
        %v1749 = vpop.permute.xlu0 %1748
        %1750 = vrot.lane.b32.xlu0 %v772, 32
        %v1751 = vpop.permute.xlu0 %1750
        %1752 = vrot.lane.b32.xlu0 %v773, 32
        %v1753 = vpop.permute.xlu0 %1752
        %1754 = vrot.lane.b32.xlu0 %v774, 32
        %v1755 = vpop.permute.xlu0 %1754
        %1756 = vrot.lane.b32.xlu0 %v775, 32
        %v1757 = vpop.permute.xlu0 %1756
        %1758 = vrot.lane.b32.xlu0 %v776, 32
        %v1759 = vpop.permute.xlu0 %1758
        %1760 = vrot.lane.b32.xlu0 %v777, 32
        %v1761 = vpop.permute.xlu0 %1760
        %1762 = vrot.lane.b32.xlu0 %v778, 32
        %v1763 = vpop.permute.xlu0 %1762
        %1764 = vrot.lane.b32.xlu0 %v779, 32
        %v1765 = vpop.permute.xlu0 %1764
        %1766 = vrot.lane.b32.xlu0 %v780, 32
        %v1767 = vpop.permute.xlu0 %1766
        %1768 = vrot.lane.b32.xlu0 %v781, 32
        %v1769 = vpop.permute.xlu0 %1768
        %1770 = vrot.lane.b32.xlu0 %v782, 32
        %v1771 = vpop.permute.xlu0 %1770
        %1772 = vrot.lane.b32.xlu0 %v783, 32
        %v1773 = vpop.permute.xlu0 %1772
        %1774 = vrot.lane.b32.xlu0 %v784, 32
        %v1775 = vpop.permute.xlu0 %1774
        %1776 = vrot.lane.b32.xlu0 %v785, 32
        %v1777 = vpop.permute.xlu0 %1776
        %v1810 = vsel %vm408, %v497, %v819
        %v1811 = vsel %vm408, %v498, %v821
        %v1812 = vsel %vm408, %v499, %v823
        %v1813 = vsel %vm408, %v500, %v825
        %v1814 = vsel %vm408, %v501, %v827
        %v1815 = vsel %vm408, %v502, %v829
        %v1816 = vsel %vm408, %v503, %v831
        %v1817 = vsel %vm408, %v504, %v833
        %v1818 = vsel %vm408, %v505, %v835
        %v1819 = vsel %vm408, %v506, %v837
        %v1820 = vsel %vm408, %v507, %v839
        %v1821 = vsel %vm408, %v508, %v841
        %v1822 = vsel %vm408, %v509, %v843
        %v1823 = vsel %vm408, %v510, %v845
        %v1824 = vsel %vm408, %v511, %v847
        %v1825 = vsel %vm408, %v512, %v849
        %v1826 = vsel %vm408, %v513, %v851
        %v1827 = vsel %vm408, %v514, %v853
        %v1828 = vsel %vm408, %v515, %v855
        %v1829 = vsel %vm408, %v516, %v857
        %v1830 = vsel %vm408, %v517, %v859
        %v1831 = vsel %vm408, %v518, %v861
        %v1832 = vsel %vm408, %v519, %v863
        %v1833 = vsel %vm408, %v520, %v865
        %v1834 = vsel %vm408, %v521, %v867
        %v1835 = vsel %vm408, %v522, %v869
        %v1836 = vsel %vm408, %v523, %v871
        %v1837 = vsel %vm408, %v524, %v873
        %v1838 = vsel %vm408, %v525, %v875
        %v1839 = vsel %vm408, %v526, %v877
        %v1840 = vsel %vm408, %v527, %v879
        %v1841 = vsel %vm408, %v528, %v881
        %vm1842 = vcmask 64512
        %v1843 = vsel %vm1842, %v1810, %v947
        %v1844 = vsel %vm1842, %v1811, %v949
        %v1845 = vsel %vm1842, %v1812, %v951
        %v1846 = vsel %vm1842, %v1813, %v953
        %v1847 = vsel %vm1842, %v1814, %v955
        %v1848 = vsel %vm1842, %v1815, %v957
        %v1849 = vsel %vm1842, %v1816, %v959
        %v1850 = vsel %vm1842, %v1817, %v961
        %v1851 = vsel %vm1842, %v1818, %v963
        %v1852 = vsel %vm1842, %v1819, %v965
        %v1853 = vsel %vm1842, %v1820, %v967
        %v1854 = vsel %vm1842, %v1821, %v969
        %v1855 = vsel %vm1842, %v1822, %v971
        %v1856 = vsel %vm1842, %v1823, %v973
        %v1857 = vsel %vm1842, %v1824, %v975
        %v1858 = vsel %vm1842, %v1825, %v977
        %v1859 = vsel %vm1842, %v1826, %v979
        %v1860 = vsel %vm1842, %v1827, %v981
        %v1861 = vsel %vm1842, %v1828, %v983
        %v1862 = vsel %vm1842, %v1829, %v985
        %v1863 = vsel %vm1842, %v1830, %v987
        %v1864 = vsel %vm1842, %v1831, %v989
        %v1865 = vsel %vm1842, %v1832, %v991
        %v1866 = vsel %vm1842, %v1833, %v993
        %v1867 = vsel %vm1842, %v1834, %v995
        %v1868 = vsel %vm1842, %v1835, %v997
        %v1869 = vsel %vm1842, %v1836, %v999
        %v1870 = vsel %vm1842, %v1837, %v1001
        %v1871 = vsel %vm1842, %v1838, %v1003
        %v1872 = vsel %vm1842, %v1839, %v1005
        %v1873 = vsel %vm1842, %v1840, %v1007
        %v1874 = vsel %vm1842, %v1841, %v1009
        %vm1875 = vcmask 97280
        %v1876 = vsel %vm1875, %v1843, %v1075
        %v1877 = vsel %vm1875, %v1844, %v1077
        %v1878 = vsel %vm1875, %v1845, %v1079
        %v1879 = vsel %vm1875, %v1846, %v1081
        %v1880 = vsel %vm1875, %v1847, %v1083
        %v1881 = vsel %vm1875, %v1848, %v1085
        %v1882 = vsel %vm1875, %v1849, %v1087
        %v1883 = vsel %vm1875, %v1850, %v1089
        %v1884 = vsel %vm1875, %v1851, %v1091
        %v1885 = vsel %vm1875, %v1852, %v1093
        %v1886 = vsel %vm1875, %v1853, %v1095
        %v1887 = vsel %vm1875, %v1854, %v1097
        %v1888 = vsel %vm1875, %v1855, %v1099
        %v1889 = vsel %vm1875, %v1856, %v1101
        %v1890 = vsel %vm1875, %v1857, %v1103
        %v1891 = vsel %vm1875, %v1858, %v1105
        %v1892 = vsel %vm1875, %v1859, %v1107
        %v1893 = vsel %vm1875, %v1860, %v1109
        %v1894 = vsel %vm1875, %v1861, %v1111
        %v1895 = vsel %vm1875, %v1862, %v1113
        %v1896 = vsel %vm1875, %v1863, %v1115
        %v1897 = vsel %vm1875, %v1864, %v1117
        %v1898 = vsel %vm1875, %v1865, %v1119
        %v1899 = vsel %vm1875, %v1866, %v1121
        %v1900 = vsel %vm1875, %v1867, %v1123
        %v1901 = vsel %vm1875, %v1868, %v1125
        %v1902 = vsel %vm1875, %v1869, %v1127
        %v1903 = vsel %vm1875, %v1870, %v1129
        %v1904 = vsel %vm1875, %v1871, %v1131
        %v1905 = vsel %vm1875, %v1872, %v1133
        %v1906 = vsel %vm1875, %v1873, %v1135
        %v1907 = vsel %vm1875, %v1874, %v1137
        %vm1908 = vcmask 130048
        %v1909 = vsel %vm1908, %v1876, %v1203
        %v1910 = vsel %vm1908, %v1877, %v1205
        %v1911 = vsel %vm1908, %v1878, %v1207
        %v1912 = vsel %vm1908, %v1879, %v1209
        %v1913 = vsel %vm1908, %v1880, %v1211
        %v1914 = vsel %vm1908, %v1881, %v1213
        %v1915 = vsel %vm1908, %v1882, %v1215
        %v1916 = vsel %vm1908, %v1883, %v1217
        %v1917 = vsel %vm1908, %v1884, %v1219
        %v1918 = vsel %vm1908, %v1885, %v1221
        %v1919 = vsel %vm1908, %v1886, %v1223
        %v1920 = vsel %vm1908, %v1887, %v1225
        %v1921 = vsel %vm1908, %v1888, %v1227
        %v1922 = vsel %vm1908, %v1889, %v1229
        %v1923 = vsel %vm1908, %v1890, %v1231
        %v1924 = vsel %vm1908, %v1891, %v1233
        %v1925 = vsel %vm1908, %v1892, %v1235
        %v1926 = vsel %vm1908, %v1893, %v1237
        %v1927 = vsel %vm1908, %v1894, %v1239
        %v1928 = vsel %vm1908, %v1895, %v1241
        %v1929 = vsel %vm1908, %v1896, %v1243
        %v1930 = vsel %vm1908, %v1897, %v1245
        %v1931 = vsel %vm1908, %v1898, %v1247
        %v1932 = vsel %vm1908, %v1899, %v1249
        %v1933 = vsel %vm1908, %v1900, %v1251
        %v1934 = vsel %vm1908, %v1901, %v1253
        %v1935 = vsel %vm1908, %v1902, %v1255
        %v1936 = vsel %vm1908, %v1903, %v1257
        %v1937 = vsel %vm1908, %v1904, %v1259
        %v1938 = vsel %vm1908, %v1905, %v1261
        %v1939 = vsel %vm1908, %v1906, %v1263
        %v1940 = vsel %vm1908, %v1907, %v1265
        %vm1941 = vcmask 162816
        %v1942 = vsel %vm1941, %v1909, %v1331
        %v1943 = vsel %vm1941, %v1910, %v1333
        %v1944 = vsel %vm1941, %v1911, %v1335
        %v1945 = vsel %vm1941, %v1912, %v1337
        %v1946 = vsel %vm1941, %v1913, %v1339
        %v1947 = vsel %vm1941, %v1914, %v1341
        %v1948 = vsel %vm1941, %v1915, %v1343
        %v1949 = vsel %vm1941, %v1916, %v1345
        %v1950 = vsel %vm1941, %v1917, %v1347
        %v1951 = vsel %vm1941, %v1918, %v1349
        %v1952 = vsel %vm1941, %v1919, %v1351
        %v1953 = vsel %vm1941, %v1920, %v1353
        %v1954 = vsel %vm1941, %v1921, %v1355
        %v1955 = vsel %vm1941, %v1922, %v1357
        %v1956 = vsel %vm1941, %v1923, %v1359
        %v1957 = vsel %vm1941, %v1924, %v1361
        %v1958 = vsel %vm1941, %v1925, %v1363
        %v1959 = vsel %vm1941, %v1926, %v1365
        %v1960 = vsel %vm1941, %v1927, %v1367
        %v1961 = vsel %vm1941, %v1928, %v1369
        %v1962 = vsel %vm1941, %v1929, %v1371
        %v1963 = vsel %vm1941, %v1930, %v1373
        %v1964 = vsel %vm1941, %v1931, %v1375
        %v1965 = vsel %vm1941, %v1932, %v1377
        %v1966 = vsel %vm1941, %v1933, %v1379
        %v1967 = vsel %vm1941, %v1934, %v1381
        %v1968 = vsel %vm1941, %v1935, %v1383
        %v1969 = vsel %vm1941, %v1936, %v1385
        %v1970 = vsel %vm1941, %v1937, %v1387
        %v1971 = vsel %vm1941, %v1938, %v1389
        %v1972 = vsel %vm1941, %v1939, %v1391
        %v1973 = vsel %vm1941, %v1940, %v1393
        %vm1974 = vcmask 195584
        %v1975 = vsel %vm1974, %v1942, %v1459
        %v1976 = vsel %vm1974, %v1943, %v1461
        %v1977 = vsel %vm1974, %v1944, %v1463
        %v1978 = vsel %vm1974, %v1945, %v1465
        %v1979 = vsel %vm1974, %v1946, %v1467
        %v1980 = vsel %vm1974, %v1947, %v1469
        %v1981 = vsel %vm1974, %v1948, %v1471
        %v1982 = vsel %vm1974, %v1949, %v1473
        %v1983 = vsel %vm1974, %v1950, %v1475
        %v1984 = vsel %vm1974, %v1951, %v1477
        %v1985 = vsel %vm1974, %v1952, %v1479
        %v1986 = vsel %vm1974, %v1953, %v1481
        %v1987 = vsel %vm1974, %v1954, %v1483
        %v1988 = vsel %vm1974, %v1955, %v1485
        %v1989 = vsel %vm1974, %v1956, %v1487
        %v1990 = vsel %vm1974, %v1957, %v1489
        %v1991 = vsel %vm1974, %v1958, %v1491
        %v1992 = vsel %vm1974, %v1959, %v1493
        %v1993 = vsel %vm1974, %v1960, %v1495
        %v1994 = vsel %vm1974, %v1961, %v1497
        %v1995 = vsel %vm1974, %v1962, %v1499
        %v1996 = vsel %vm1974, %v1963, %v1501
        %v1997 = vsel %vm1974, %v1964, %v1503
        %v1998 = vsel %vm1974, %v1965, %v1505
        %v1999 = vsel %vm1974, %v1966, %v1507
        %v2000 = vsel %vm1974, %v1967, %v1509
        %v2001 = vsel %vm1974, %v1968, %v1511
        %v2002 = vsel %vm1974, %v1969, %v1513
        %v2003 = vsel %vm1974, %v1970, %v1515
        %v2004 = vsel %vm1974, %v1971, %v1517
        %v2005 = vsel %vm1974, %v1972, %v1519
        %v2006 = vsel %vm1974, %v1973, %v1521
        %vm2007 = vcmask 228352
        %v2008 = vsel %vm2007, %v1975, %v1587
        %v2009 = vsel %vm2007, %v1976, %v1589
        %v2010 = vsel %vm2007, %v1977, %v1591
        %v2011 = vsel %vm2007, %v1978, %v1593
        %v2012 = vsel %vm2007, %v1979, %v1595
        %v2013 = vsel %vm2007, %v1980, %v1597
        %v2014 = vsel %vm2007, %v1981, %v1599
        %v2015 = vsel %vm2007, %v1982, %v1601
        %v2016 = vsel %vm2007, %v1983, %v1603
        %v2017 = vsel %vm2007, %v1984, %v1605
        %v2018 = vsel %vm2007, %v1985, %v1607
        %v2019 = vsel %vm2007, %v1986, %v1609
        %v2020 = vsel %vm2007, %v1987, %v1611
        %v2021 = vsel %vm2007, %v1988, %v1613
        %v2022 = vsel %vm2007, %v1989, %v1615
        %v2023 = vsel %vm2007, %v1990, %v1617
        %v2024 = vsel %vm2007, %v1991, %v1619
        %v2025 = vsel %vm2007, %v1992, %v1621
        %v2026 = vsel %vm2007, %v1993, %v1623
        %v2027 = vsel %vm2007, %v1994, %v1625
        %v2028 = vsel %vm2007, %v1995, %v1627
        %v2029 = vsel %vm2007, %v1996, %v1629
        %v2030 = vsel %vm2007, %v1997, %v1631
        %v2031 = vsel %vm2007, %v1998, %v1633
        %v2032 = vsel %vm2007, %v1999, %v1635
        %v2033 = vsel %vm2007, %v2000, %v1637
        %v2034 = vsel %vm2007, %v2001, %v1639
        %v2035 = vsel %vm2007, %v2002, %v1641
        %v2036 = vsel %vm2007, %v2003, %v1643
        %v2037 = vsel %vm2007, %v2004, %v1645
        %v2038 = vsel %vm2007, %v2005, %v1647
        %v2039 = vsel %vm2007, %v2006, %v1649
        %vm2040 = vcmask 261120
        %v2041 = vsel %vm2040, %v2008, %v1715
        %v2042 = vsel %vm2040, %v2009, %v1717
        %v2043 = vsel %vm2040, %v2010, %v1719
        %v2044 = vsel %vm2040, %v2011, %v1721
        %v2045 = vsel %vm2040, %v2012, %v1723
        %v2046 = vsel %vm2040, %v2013, %v1725
        %v2047 = vsel %vm2040, %v2014, %v1727
        %v2048 = vsel %vm2040, %v2015, %v1729
        %v2049 = vsel %vm2040, %v2016, %v1731
        %v2050 = vsel %vm2040, %v2017, %v1733
        %v2051 = vsel %vm2040, %v2018, %v1735
        %v2052 = vsel %vm2040, %v2019, %v1737
        %v2053 = vsel %vm2040, %v2020, %v1739
        %v2054 = vsel %vm2040, %v2021, %v1741
        %v2055 = vsel %vm2040, %v2022, %v1743
        %v2056 = vsel %vm2040, %v2023, %v1745
        %v2057 = vsel %vm2040, %v2024, %v1747
        %v2058 = vsel %vm2040, %v2025, %v1749
        %v2059 = vsel %vm2040, %v2026, %v1751
        %v2060 = vsel %vm2040, %v2027, %v1753
        %v2061 = vsel %vm2040, %v2028, %v1755
        %v2062 = vsel %vm2040, %v2029, %v1757
        %v2063 = vsel %vm2040, %v2030, %v1759
        %v2064 = vsel %vm2040, %v2031, %v1761
        %v2065 = vsel %vm2040, %v2032, %v1763
        %v2066 = vsel %vm2040, %v2033, %v1765
        %v2067 = vsel %vm2040, %v2034, %v1767
        %v2068 = vsel %vm2040, %v2035, %v1769
        %v2069 = vsel %vm2040, %v2036, %v1771
        %v2070 = vsel %vm2040, %v2037, %v1773
        %v2071 = vsel %vm2040, %v2038, %v1775
        %v2072 = vsel %vm2040, %v2039, %v1777
        %v2073 = vld [vmem:[%s3] sm:$0xff]
        %v2074 = vld [vmem:[%s3 + $0x8] sm:$0xff]
        %v2075 = vld [vmem:[%s3 + $0x10] sm:$0xff]
        %v2076 = vld [vmem:[%s3 + $0x18] sm:$0xff]
        %v2077 = vld [vmem:[%s3 + $0x20] sm:$0xf]
        %v2078 = vld [vmem:[%s4] sm:$0x1]
        %v2080 = vlaneseq
        %v2081 = vshrl.u32 %v2080, 7
        %v2082 = vsub.s32 0, %v2081
        %v2083 = vrot.slane %v2078, %v2082
        %vm2085 = vcmask 293888
        %v2087 = vsel %vm2085, %v2041, 0
        %v2090 = vsel %vm2085, %v2042, 0
        %v2093 = vsel %vm2085, %v2043, 0
        %v2096 = vsel %vm2085, %v2044, 0
        %v2099 = vsel %vm2085, %v2045, 0
        %v2102 = vsel %vm2085, %v2046, 0
        %v2105 = vsel %vm2085, %v2047, 0
        %v2108 = vsel %vm2085, %v2048, 0
        %v2111 = vsel %vm2085, %v2049, 0
        %v2114 = vsel %vm2085, %v2050, 0
        %v2117 = vsel %vm2085, %v2051, 0
        %v2120 = vsel %vm2085, %v2052, 0
        %v2123 = vsel %vm2085, %v2053, 0
        %v2126 = vsel %vm2085, %v2054, 0
        %v2129 = vsel %vm2085, %v2055, 0
        %v2132 = vsel %vm2085, %v2056, 0
        %v2135 = vsel %vm2085, %v2057, 0
        %v2138 = vsel %vm2085, %v2058, 0
        %v2141 = vsel %vm2085, %v2059, 0
        %v2144 = vsel %vm2085, %v2060, 0
        %v2147 = vsel %vm2085, %v2061, 0
        %v2150 = vsel %vm2085, %v2062, 0
        %v2153 = vsel %vm2085, %v2063, 0
        %v2156 = vsel %vm2085, %v2064, 0
        %v2159 = vsel %vm2085, %v2065, 0
        %v2162 = vsel %vm2085, %v2066, 0
        %v2165 = vsel %vm2085, %v2067, 0
        %v2168 = vsel %vm2085, %v2068, 0
        %v2171 = vsel %vm2085, %v2069, 0
        %v2174 = vsel %vm2085, %v2070, 0
        %v2177 = vsel %vm2085, %v2071, 0
        %v2180 = vsel %vm2085, %v2072, 0
        %vm2182 = vcmask 1043456
        %v2184 = vsel %vm2182, %v2077, 0
        %2186 = vmatprep.subr.mxu0 0.0
        %2187 = vmatpush1.msra.mxu0 0.0
        %2188 = vmatprep.subr.mxu0 0.0
        %2189 = vmatpush1.msra.mxu0 0.0
        %2190 = vmatprep.subr.mxu0 0.0
        %2191 = vmatpush1.msra.mxu0 0.0
        %2192 = vmatprep.subr.mxu0 0.0
        %2193 = vmatpush1.msra.mxu0 0.0
        %2194 = vmatprep.subr.mxu0 0.0
        %2195 = vmatpush1.msra.mxu0 0.0
        %2196 = vmatprep.subr.mxu0 0.0
        %2197 = vmatpush1.msra.mxu0 0.0
        %2198 = vmatprep.subr.mxu0 0.0
        %2199 = vmatpush1.msra.mxu0 0.0
        %2200 = vmatprep.subr.mxu0 0.0
        %2201 = vmatpush1.msra.mxu0 0.0
        %2202 = vmatprep.subr.mxu0 0.0
        %2203 = vmatpush1.msra.mxu0 0.0
        %2204 = vmatprep.subr.mxu0 0.0
        %2205 = vmatpush1.msra.mxu0 0.0
        %2206 = vmatprep.subr.mxu0 0.0
        %2207 = vmatpush1.msra.mxu0 0.0
        %2208 = vmatprep.subr.mxu0 0.0
        %2209 = vmatpush1.msra.mxu0 %v2184
        %2210 = vmatprep.subr.mxu0 0.0
        %2211 = vmatpush1.msra.mxu0 %v2076
        %2212 = vmatprep.subr.mxu0 0.0
        %2213 = vmatpush1.msra.mxu0 %v2075
        %2214 = vmatprep.subr.mxu0 0.0
        %2215 = vmatpush1.msra.mxu0 %v2074
        %2216 = vmatprep.subr.mxu0 0.0
        %2217 = vmatpush1.msra.mxu0 %v2073
        %2218 = vmatprep.subr.mxu0 0.0
        %2219 = vmatpush2.msra.mxu0 0.0
        %2220 = vmatprep.subr.mxu0 0.0
        %2221 = vmatpush2.msra.mxu0 0.0
        %2222 = vmatprep.subr.mxu0 0.0
        %2223 = vmatpush2.msra.mxu0 0.0
        %2224 = vmatprep.subr.mxu0 0.0
        %2225 = vmatpush2.msra.mxu0 0.0
        %2226 = vmatprep.subr.mxu0 0.0
        %2227 = vmatpush2.msra.mxu0 0.0
        %2228 = vmatprep.subr.mxu0 0.0
        %2229 = vmatpush2.msra.mxu0 0.0
        %2230 = vmatprep.subr.mxu0 0.0
        %2231 = vmatpush2.msra.mxu0 0.0
        %2232 = vmatprep.subr.mxu0 0.0
        %2233 = vmatpush2.msra.mxu0 0.0
        %2234 = vmatprep.subr.mxu0 0.0
        %2235 = vmatpush2.msra.mxu0 0.0
        %2236 = vmatprep.subr.mxu0 0.0
        %2237 = vmatpush2.msra.mxu0 0.0
        %2238 = vmatprep.subr.mxu0 0.0
        %2239 = vmatpush2.msra.mxu0 0.0
        %2240 = vmatprep.subr.mxu0 0.0
        %2241 = vmatpush2.msra.mxu0 0.0
        %2242 = vmatprep.subr.mxu0 0.0
        %2243 = vmatpush2.msra.mxu0 0.0
        %2244 = vmatprep.subr.mxu0 0.0
        %2245 = vmatpush2.msra.mxu0 0.0
        %2246 = vmatprep.subr.mxu0 0.0
        %2247 = vmatpush2.msra.mxu0 0.0
        %2248 = vmatprep.subr.mxu0 0.0
        %2249 = vmatpush2.msra.mxu0 0.0
        %2250 = vmatprep.mubr.f32.mxu0 0.0
        %2251 = vmatmul.mubr.f32.gmra.mxu0 %v2087
        %v2252 = vpop.f32.mrf.mxu0
        %v2253 = vadd.f32 %v2083, %v2252
        %v2254 = vpop.f32.mrf.mxu0
        %2255 = vmatprep.mubr.f32.mxu0 0.0
        %2256 = vmatmul.mubr.f32.gmra.mxu0 %v2090
        %v2257 = vpop.f32.mrf.mxu0
        %v2258 = vadd.f32 %v2083, %v2257
        %v2259 = vpop.f32.mrf.mxu0
        %2260 = vmatprep.mubr.f32.mxu0 0.0
        %2261 = vmatmul.mubr.f32.gmra.mxu0 %v2093
        %v2262 = vpop.f32.mrf.mxu0
        %v2263 = vadd.f32 %v2083, %v2262
        %v2264 = vpop.f32.mrf.mxu0
        %2265 = vmatprep.mubr.f32.mxu0 0.0
        %2266 = vmatmul.mubr.f32.gmra.mxu0 %v2096
        %v2267 = vpop.f32.mrf.mxu0
        %v2268 = vadd.f32 %v2083, %v2267
        %v2269 = vpop.f32.mrf.mxu0
        %2270 = vmatprep.mubr.f32.mxu0 0.0
        %2271 = vmatmul.mubr.f32.gmra.mxu0 %v2099
        %v2272 = vpop.f32.mrf.mxu0
        %v2273 = vadd.f32 %v2083, %v2272
        %v2274 = vpop.f32.mrf.mxu0
        %2275 = vmatprep.mubr.f32.mxu0 0.0
        %2276 = vmatmul.mubr.f32.gmra.mxu0 %v2102
        %v2277 = vpop.f32.mrf.mxu0
        %v2278 = vadd.f32 %v2083, %v2277
        %v2279 = vpop.f32.mrf.mxu0
        %2280 = vmatprep.mubr.f32.mxu0 0.0
        %2281 = vmatmul.mubr.f32.gmra.mxu0 %v2105
        %v2282 = vpop.f32.mrf.mxu0
        %v2283 = vadd.f32 %v2083, %v2282
        %v2284 = vpop.f32.mrf.mxu0
        %2285 = vmatprep.mubr.f32.mxu0 0.0
        %2286 = vmatmul.mubr.f32.gmra.mxu0 %v2108
        %v2287 = vpop.f32.mrf.mxu0
        %v2288 = vadd.f32 %v2083, %v2287
        %v2289 = vpop.f32.mrf.mxu0
        %2290 = vmatprep.mubr.f32.mxu0 0.0
        %2291 = vmatmul.mubr.f32.gmra.mxu0 %v2111
        %v2292 = vpop.f32.mrf.mxu0
        %v2293 = vadd.f32 %v2083, %v2292
        %v2294 = vpop.f32.mrf.mxu0
        %2295 = vmatprep.mubr.f32.mxu0 0.0
        %2296 = vmatmul.mubr.f32.gmra.mxu0 %v2114
        %v2297 = vpop.f32.mrf.mxu0
        %v2298 = vadd.f32 %v2083, %v2297
        %v2299 = vpop.f32.mrf.mxu0
        %2300 = vmatprep.mubr.f32.mxu0 0.0
        %2301 = vmatmul.mubr.f32.gmra.mxu0 %v2117
        %v2302 = vpop.f32.mrf.mxu0
        %v2303 = vadd.f32 %v2083, %v2302
        %v2304 = vpop.f32.mrf.mxu0
        %2305 = vmatprep.mubr.f32.mxu0 0.0
        %2306 = vmatmul.mubr.f32.gmra.mxu0 %v2120
        %v2307 = vpop.f32.mrf.mxu0
        %v2308 = vadd.f32 %v2083, %v2307
        %v2309 = vpop.f32.mrf.mxu0
        %2310 = vmatprep.mubr.f32.mxu0 0.0
        %2311 = vmatmul.mubr.f32.gmra.mxu0 %v2123
        %v2312 = vpop.f32.mrf.mxu0
        %v2313 = vadd.f32 %v2083, %v2312
        %v2314 = vpop.f32.mrf.mxu0
        %2315 = vmatprep.mubr.f32.mxu0 0.0
        %2316 = vmatmul.mubr.f32.gmra.mxu0 %v2126
        %v2317 = vpop.f32.mrf.mxu0
        %v2318 = vadd.f32 %v2083, %v2317
        %v2319 = vpop.f32.mrf.mxu0
        %2320 = vmatprep.mubr.f32.mxu0 0.0
        %2321 = vmatmul.mubr.f32.gmra.mxu0 %v2129
        %v2322 = vpop.f32.mrf.mxu0
        %v2323 = vadd.f32 %v2083, %v2322
        %v2324 = vpop.f32.mrf.mxu0
        %2325 = vmatprep.mubr.f32.mxu0 0.0
        %2326 = vmatmul.mubr.f32.gmra.mxu0 %v2132
        %v2327 = vpop.f32.mrf.mxu0
        %v2328 = vadd.f32 %v2083, %v2327
        %v2329 = vpop.f32.mrf.mxu0
        %2330 = vmatprep.mubr.f32.mxu0 0.0
        %2331 = vmatmul.mubr.f32.gmra.mxu0 %v2135
        %v2332 = vpop.f32.mrf.mxu0
        %v2333 = vadd.f32 %v2083, %v2332
        %v2334 = vpop.f32.mrf.mxu0
        %2335 = vmatprep.mubr.f32.mxu0 0.0
        %2336 = vmatmul.mubr.f32.gmra.mxu0 %v2138
        %v2337 = vpop.f32.mrf.mxu0
        %v2338 = vadd.f32 %v2083, %v2337
        %v2339 = vpop.f32.mrf.mxu0
        %2340 = vmatprep.mubr.f32.mxu0 0.0
        %2341 = vmatmul.mubr.f32.gmra.mxu0 %v2141
        %v2342 = vpop.f32.mrf.mxu0
        %v2343 = vadd.f32 %v2083, %v2342
        %v2344 = vpop.f32.mrf.mxu0
        %2345 = vmatprep.mubr.f32.mxu0 0.0
        %2346 = vmatmul.mubr.f32.gmra.mxu0 %v2144
        %v2347 = vpop.f32.mrf.mxu0
        %v2348 = vadd.f32 %v2083, %v2347
        %v2349 = vpop.f32.mrf.mxu0
        %2350 = vmatprep.mubr.f32.mxu0 0.0
        %2351 = vmatmul.mubr.f32.gmra.mxu0 %v2147
        %v2352 = vpop.f32.mrf.mxu0
        %v2353 = vadd.f32 %v2083, %v2352
        %v2354 = vpop.f32.mrf.mxu0
        %2355 = vmatprep.mubr.f32.mxu0 0.0
        %2356 = vmatmul.mubr.f32.gmra.mxu0 %v2150
        %v2357 = vpop.f32.mrf.mxu0
        %v2358 = vadd.f32 %v2083, %v2357
        %v2359 = vpop.f32.mrf.mxu0
        %2360 = vmatprep.mubr.f32.mxu0 0.0
        %2361 = vmatmul.mubr.f32.gmra.mxu0 %v2153
        %v2362 = vpop.f32.mrf.mxu0
        %v2363 = vadd.f32 %v2083, %v2362
        %v2364 = vpop.f32.mrf.mxu0
        %2365 = vmatprep.mubr.f32.mxu0 0.0
        %2366 = vmatmul.mubr.f32.gmra.mxu0 %v2156
        %v2367 = vpop.f32.mrf.mxu0
        %v2368 = vadd.f32 %v2083, %v2367
        %v2369 = vpop.f32.mrf.mxu0
        %2370 = vmatprep.mubr.f32.mxu0 0.0
        %2371 = vmatmul.mubr.f32.gmra.mxu0 %v2159
        %v2372 = vpop.f32.mrf.mxu0
        %v2373 = vadd.f32 %v2083, %v2372
        %v2374 = vpop.f32.mrf.mxu0
        %2375 = vmatprep.mubr.f32.mxu0 0.0
        %2376 = vmatmul.mubr.f32.gmra.mxu0 %v2162
        %v2377 = vpop.f32.mrf.mxu0
        %v2378 = vadd.f32 %v2083, %v2377
        %v2379 = vpop.f32.mrf.mxu0
        %2380 = vmatprep.mubr.f32.mxu0 0.0
        %2381 = vmatmul.mubr.f32.gmra.mxu0 %v2165
        %v2382 = vpop.f32.mrf.mxu0
        %v2383 = vadd.f32 %v2083, %v2382
        %v2384 = vpop.f32.mrf.mxu0
        %2385 = vmatprep.mubr.f32.mxu0 0.0
        %2386 = vmatmul.mubr.f32.gmra.mxu0 %v2168
        %v2387 = vpop.f32.mrf.mxu0
        %v2388 = vadd.f32 %v2083, %v2387
        %v2389 = vpop.f32.mrf.mxu0
        %2390 = vmatprep.mubr.f32.mxu0 0.0
        %2391 = vmatmul.mubr.f32.gmra.mxu0 %v2171
        %v2392 = vpop.f32.mrf.mxu0
        %v2393 = vadd.f32 %v2083, %v2392
        %v2394 = vpop.f32.mrf.mxu0
        %2395 = vmatprep.mubr.f32.mxu0 0.0
        %2396 = vmatmul.mubr.f32.gmra.mxu0 %v2174
        %v2397 = vpop.f32.mrf.mxu0
        %v2398 = vadd.f32 %v2083, %v2397
        %v2399 = vpop.f32.mrf.mxu0
        %2400 = vmatprep.mubr.f32.mxu0 0.0
        %2401 = vmatmul.mubr.f32.gmra.mxu0 %v2177
        %v2402 = vpop.f32.mrf.mxu0
        %v2403 = vadd.f32 %v2083, %v2402
        %v2404 = vpop.f32.mrf.mxu0
        %2405 = vmatprep.mubr.f32.mxu0 0.0
        %2406 = vmatmul.mubr.f32.gmra.mxu0 %v2180
        %v2407 = vpop.f32.mrf.mxu0
        %v2408 = vadd.f32 %v2083, %v2407
        %v2409 = vpop.f32.mrf.mxu0
        %2410 = vdwg.mxu0
        %2411 = vst.msk [vmem:[%s297] sm:$0xff] %vm408, %v2253
        %2412 = vst.msk [vmem:[%s297 + $0x8] sm:$0xff] %vm408, %v2258
        %2413 = vst.msk [vmem:[%s297 + $0x10] sm:$0xff] %vm408, %v2263
        %2414 = vst.msk [vmem:[%s297 + $0x18] sm:$0xff] %vm408, %v2268
        %2415 = vst.msk [vmem:[%s297 + $0x20] sm:$0xff] %vm408, %v2273
        %2416 = vst.msk [vmem:[%s297 + $0x28] sm:$0xff] %vm408, %v2278
        %2417 = vst.msk [vmem:[%s297 + $0x30] sm:$0xff] %vm408, %v2283
        %2418 = vst.msk [vmem:[%s297 + $0x38] sm:$0xff] %vm408, %v2288
        %2419 = vst.msk [vmem:[%s297 + $0x40] sm:$0xff] %vm408, %v2293
        %2420 = vst.msk [vmem:[%s297 + $0x48] sm:$0xff] %vm408, %v2298
        %2421 = vst.msk [vmem:[%s297 + $0x50] sm:$0xff] %vm408, %v2303
        %2422 = vst.msk [vmem:[%s297 + $0x58] sm:$0xff] %vm408, %v2308
        %2423 = vst.msk [vmem:[%s297 + $0x60] sm:$0xff] %vm408, %v2313
        %2424 = vst.msk [vmem:[%s297 + $0x68] sm:$0xff] %vm408, %v2318
        %2425 = vst.msk [vmem:[%s297 + $0x70] sm:$0xff] %vm408, %v2323
        %2426 = vst.msk [vmem:[%s297 + $0x78] sm:$0xff] %vm408, %v2328
        %2427 = vst.msk [vmem:[%s297 + $0x80] sm:$0xff] %vm408, %v2333
        %2428 = vst.msk [vmem:[%s297 + $0x88] sm:$0xff] %vm408, %v2338
        %2429 = vst.msk [vmem:[%s297 + $0x90] sm:$0xff] %vm408, %v2343
        %2430 = vst.msk [vmem:[%s297 + $0x98] sm:$0xff] %vm408, %v2348
        %2431 = vst.msk [vmem:[%s297 + $0xa0] sm:$0xff] %vm408, %v2353
        %2432 = vst.msk [vmem:[%s297 + $0xa8] sm:$0xff] %vm408, %v2358
        %2433 = vst.msk [vmem:[%s297 + $0xb0] sm:$0xff] %vm408, %v2363
        %2434 = vst.msk [vmem:[%s297 + $0xb8] sm:$0xff] %vm408, %v2368
        %2435 = vst.msk [vmem:[%s297 + $0xc0] sm:$0xff] %vm408, %v2373
        %2436 = vst.msk [vmem:[%s297 + $0xc8] sm:$0xff] %vm408, %v2378
        %2437 = vst.msk [vmem:[%s297 + $0xd0] sm:$0xff] %vm408, %v2383
        %2438 = vst.msk [vmem:[%s297 + $0xd8] sm:$0xff] %vm408, %v2388
        %2439 = vst.msk [vmem:[%s297 + $0xe0] sm:$0xff] %vm408, %v2393
        %2440 = vst.msk [vmem:[%s297 + $0xe8] sm:$0xff] %vm408, %v2398
        %2441 = vst.msk [vmem:[%s297 + $0xf0] sm:$0xff] %vm408, %v2403
        %2442 = vst.msk [vmem:[%s297 + $0xf8] sm:$0xff] %vm408, %v2408
        %v2443 = vsel %vm408, %v2253, 0.0
        %v2444 = vsel %vm408, %v2258, 0.0
        %v2445 = vadd.f32 %v2443, %v2444
        %v2446 = vsel %vm408, %v2263, 0.0
        %v2447 = vadd.f32 %v2445, %v2446
        %v2448 = vsel %vm408, %v2268, 0.0
        %v2449 = vadd.f32 %v2447, %v2448
        %v2450 = vsel %vm408, %v2273, 0.0
        %v2451 = vadd.f32 %v2449, %v2450
        %v2452 = vsel %vm408, %v2278, 0.0
        %v2453 = vadd.f32 %v2451, %v2452
        %v2454 = vsel %vm408, %v2283, 0.0
        %v2455 = vadd.f32 %v2453, %v2454
        %v2456 = vsel %vm408, %v2288, 0.0
        %v2457 = vadd.f32 %v2455, %v2456
        %v2458 = vsel %vm408, %v2293, 0.0
        %v2459 = vadd.f32 %v2457, %v2458
        %v2460 = vsel %vm408, %v2298, 0.0
        %v2461 = vadd.f32 %v2459, %v2460
        %v2462 = vsel %vm408, %v2303, 0.0
        %v2463 = vadd.f32 %v2461, %v2462
        %v2464 = vsel %vm408, %v2308, 0.0
        %v2465 = vadd.f32 %v2463, %v2464
        %v2466 = vsel %vm408, %v2313, 0.0
        %v2467 = vadd.f32 %v2465, %v2466
        %v2468 = vsel %vm408, %v2318, 0.0
        %v2469 = vadd.f32 %v2467, %v2468
        %v2470 = vsel %vm408, %v2323, 0.0
        %v2471 = vadd.f32 %v2469, %v2470
        %v2472 = vsel %vm408, %v2328, 0.0
        %v2473 = vadd.f32 %v2471, %v2472
        %v2474 = vsel %vm408, %v2333, 0.0
        %v2475 = vadd.f32 %v2473, %v2474
        %v2476 = vsel %vm408, %v2338, 0.0
        %v2477 = vadd.f32 %v2475, %v2476
        %v2478 = vsel %vm408, %v2343, 0.0
        %v2479 = vadd.f32 %v2477, %v2478
        %v2480 = vsel %vm408, %v2348, 0.0
        %v2481 = vadd.f32 %v2479, %v2480
        %v2482 = vsel %vm408, %v2353, 0.0
        %v2483 = vadd.f32 %v2481, %v2482
        %v2484 = vsel %vm408, %v2358, 0.0
        %v2485 = vadd.f32 %v2483, %v2484
        %v2486 = vsel %vm408, %v2363, 0.0
        %v2487 = vadd.f32 %v2485, %v2486
        %v2488 = vsel %vm408, %v2368, 0.0
        %v2489 = vadd.f32 %v2487, %v2488
        %v2490 = vsel %vm408, %v2373, 0.0
        %v2491 = vadd.f32 %v2489, %v2490
        %v2492 = vsel %vm408, %v2378, 0.0
        %v2493 = vadd.f32 %v2491, %v2492
        %v2494 = vsel %vm408, %v2383, 0.0
        %v2495 = vadd.f32 %v2493, %v2494
        %v2496 = vsel %vm408, %v2388, 0.0
        %v2497 = vadd.f32 %v2495, %v2496
        %v2498 = vsel %vm408, %v2393, 0.0
        %v2499 = vadd.f32 %v2497, %v2498
        %v2500 = vsel %vm408, %v2398, 0.0
        %v2501 = vadd.f32 %v2499, %v2500
        %v2502 = vsel %vm408, %v2403, 0.0
        %v2503 = vadd.f32 %v2501, %v2502
        %v2504 = vsel %vm408, %v2408, 0.0
        %v2505 = vadd.f32 %v2503, %v2504
        %v2506 = vrot.slane %v2505, 4
        %v2507 = vadd.f32 %v2505, %v2506
        %v2508 = vrot.slane %v2507, 2
        %v2509 = vadd.f32 %v2507, %v2508
        %v2510 = vrot.slane %v2509, 1
        %v2511 = vadd.f32 %v2509, %v2510
        %v2512 = vmul.f32 %v2511, 0.00390625
        %v2513 = vsub.f32 %v2253, %v2512
        %v2514 = vsub.f32 %v2258, %v2512
        %v2515 = vsub.f32 %v2263, %v2512
        %v2516 = vsub.f32 %v2268, %v2512
        %v2517 = vsub.f32 %v2273, %v2512
        %v2518 = vsub.f32 %v2278, %v2512
        %v2519 = vsub.f32 %v2283, %v2512
        %v2520 = vsub.f32 %v2288, %v2512
        %v2521 = vsub.f32 %v2293, %v2512
        %v2522 = vsub.f32 %v2298, %v2512
        %v2523 = vsub.f32 %v2303, %v2512
        %v2524 = vsub.f32 %v2308, %v2512
        %v2525 = vsub.f32 %v2313, %v2512
        %v2526 = vsub.f32 %v2318, %v2512
        %v2527 = vsub.f32 %v2323, %v2512
        %v2528 = vsub.f32 %v2328, %v2512
        %v2529 = vsub.f32 %v2333, %v2512
        %v2530 = vsub.f32 %v2338, %v2512
        %v2531 = vsub.f32 %v2343, %v2512
        %v2532 = vsub.f32 %v2348, %v2512
        %v2533 = vsub.f32 %v2353, %v2512
        %v2534 = vsub.f32 %v2358, %v2512
        %v2535 = vsub.f32 %v2363, %v2512
        %v2536 = vsub.f32 %v2368, %v2512
        %v2537 = vsub.f32 %v2373, %v2512
        %v2538 = vsub.f32 %v2378, %v2512
        %v2539 = vsub.f32 %v2383, %v2512
        %v2540 = vsub.f32 %v2388, %v2512
        %v2541 = vsub.f32 %v2393, %v2512
        %v2542 = vsub.f32 %v2398, %v2512
        %v2543 = vsub.f32 %v2403, %v2512
        %v2544 = vsub.f32 %v2408, %v2512
        %vm2545 = vcmask 24576
        %2546 = vst.msk [vmem:[%s281] sm:$0x1] %vm2545, %v2511
        %v2547 = vmul.f32 %v2513, %v2513
        %v2548 = vmul.f32 %v2514, %v2514
        %v2549 = vmul.f32 %v2515, %v2515
        %v2550 = vmul.f32 %v2516, %v2516
        %v2551 = vmul.f32 %v2517, %v2517
        %v2552 = vmul.f32 %v2518, %v2518
        %v2553 = vmul.f32 %v2519, %v2519
        %v2554 = vmul.f32 %v2520, %v2520
        %v2555 = vmul.f32 %v2521, %v2521
        %v2556 = vmul.f32 %v2522, %v2522
        %v2557 = vmul.f32 %v2523, %v2523
        %v2558 = vmul.f32 %v2524, %v2524
        %v2559 = vmul.f32 %v2525, %v2525
        %v2560 = vmul.f32 %v2526, %v2526
        %v2561 = vmul.f32 %v2527, %v2527
        %v2562 = vmul.f32 %v2528, %v2528
        %v2563 = vmul.f32 %v2529, %v2529
        %v2564 = vmul.f32 %v2530, %v2530
        %v2565 = vmul.f32 %v2531, %v2531
        %v2566 = vmul.f32 %v2532, %v2532
        %v2567 = vmul.f32 %v2533, %v2533
        %v2568 = vmul.f32 %v2534, %v2534
        %v2569 = vmul.f32 %v2535, %v2535
        %v2570 = vmul.f32 %v2536, %v2536
        %v2571 = vmul.f32 %v2537, %v2537
        %v2572 = vmul.f32 %v2538, %v2538
        %v2573 = vmul.f32 %v2539, %v2539
        %v2574 = vmul.f32 %v2540, %v2540
        %v2575 = vmul.f32 %v2541, %v2541
        %v2576 = vmul.f32 %v2542, %v2542
        %v2577 = vmul.f32 %v2543, %v2543
        %v2578 = vmul.f32 %v2544, %v2544
        %v2579 = vsel %vm408, %v2547, 0.0
        %v2580 = vsel %vm408, %v2548, 0.0
        %v2581 = vadd.f32 %v2579, %v2580
        %v2582 = vsel %vm408, %v2549, 0.0
        %v2583 = vadd.f32 %v2581, %v2582
        %v2584 = vsel %vm408, %v2550, 0.0
        %v2585 = vadd.f32 %v2583, %v2584
        %v2586 = vsel %vm408, %v2551, 0.0
        %v2587 = vadd.f32 %v2585, %v2586
        %v2588 = vsel %vm408, %v2552, 0.0
        %v2589 = vadd.f32 %v2587, %v2588
        %v2590 = vsel %vm408, %v2553, 0.0
        %v2591 = vadd.f32 %v2589, %v2590
        %v2592 = vsel %vm408, %v2554, 0.0
        %v2593 = vadd.f32 %v2591, %v2592
        %v2594 = vsel %vm408, %v2555, 0.0
        %v2595 = vadd.f32 %v2593, %v2594
        %v2596 = vsel %vm408, %v2556, 0.0
        %v2597 = vadd.f32 %v2595, %v2596
        %v2598 = vsel %vm408, %v2557, 0.0
        %v2599 = vadd.f32 %v2597, %v2598
        %v2600 = vsel %vm408, %v2558, 0.0
        %v2601 = vadd.f32 %v2599, %v2600
        %v2602 = vsel %vm408, %v2559, 0.0
        %v2603 = vadd.f32 %v2601, %v2602
        %v2604 = vsel %vm408, %v2560, 0.0
        %v2605 = vadd.f32 %v2603, %v2604
        %v2606 = vsel %vm408, %v2561, 0.0
        %v2607 = vadd.f32 %v2605, %v2606
        %v2608 = vsel %vm408, %v2562, 0.0
        %v2609 = vadd.f32 %v2607, %v2608
        %v2610 = vsel %vm408, %v2563, 0.0
        %v2611 = vadd.f32 %v2609, %v2610
        %v2612 = vsel %vm408, %v2564, 0.0
        %v2613 = vadd.f32 %v2611, %v2612
        %v2614 = vsel %vm408, %v2565, 0.0
        %v2615 = vadd.f32 %v2613, %v2614
        %v2616 = vsel %vm408, %v2566, 0.0
        %v2617 = vadd.f32 %v2615, %v2616
        %v2618 = vsel %vm408, %v2567, 0.0
        %v2619 = vadd.f32 %v2617, %v2618
        %v2620 = vsel %vm408, %v2568, 0.0
        %v2621 = vadd.f32 %v2619, %v2620
        %v2622 = vsel %vm408, %v2569, 0.0
        %v2623 = vadd.f32 %v2621, %v2622
        %v2624 = vsel %vm408, %v2570, 0.0
        %v2625 = vadd.f32 %v2623, %v2624
        %v2626 = vsel %vm408, %v2571, 0.0
        %v2627 = vadd.f32 %v2625, %v2626
        %v2628 = vsel %vm408, %v2572, 0.0
        %v2629 = vadd.f32 %v2627, %v2628
        %v2630 = vsel %vm408, %v2573, 0.0
        %v2631 = vadd.f32 %v2629, %v2630
        %v2632 = vsel %vm408, %v2574, 0.0
        %v2633 = vadd.f32 %v2631, %v2632
        %v2634 = vsel %vm408, %v2575, 0.0
        %v2635 = vadd.f32 %v2633, %v2634
        %v2636 = vsel %vm408, %v2576, 0.0
        %v2637 = vadd.f32 %v2635, %v2636
        %v2638 = vsel %vm408, %v2577, 0.0
        %v2639 = vadd.f32 %v2637, %v2638
        %v2640 = vsel %vm408, %v2578, 0.0
        %v2641 = vadd.f32 %v2639, %v2640
        %v2642 = vrot.slane %v2641, 4
        %v2643 = vadd.f32 %v2641, %v2642
        %v2644 = vrot.slane %v2643, 2
        %v2645 = vadd.f32 %v2643, %v2644
        %v2646 = vrot.slane %v2645, 1
        %v2647 = vadd.f32 %v2645, %v2646
        %2648 = vst.msk [vmem:[%s287] sm:$0x1] %vm2545, %v2647
        %p2649 = scmp.lt.s32.totalorder %s25, 1
        %s2650 = scalar_select %p2649, %s25, 1
        %s2651 = smul.addr %s2650, 32
        %s2652 = smul.addr %s2651, 8
        %s2653 = scalar_lea.vmem %s5, %s2652
        %s2654 = sand.u32 %s169, 1
        %s2655 = scalar_lea.sflag [#allocation4], %s2654
        %s2656 = sand.u32 %s169, 1
        %s2657 = scalar_lea.vmem [#allocation3], %s2656
        %s2658 = sand.u32 %s195, 1
        %s2659 = scalar_lea.sflag [#allocation6], %s2658
        %s2660 = sand.u32 %s195, 1
        %s2661 = scalar_lea.vmem [#allocation5], %s2660
        // Predicated region
        $region41: #{tpu_custom_call.1} parent=39 // pred_check
          %p2662 = pneg %p153
        $region42: #{tpu_custom_call.1} parent=39 // pred_check_branch
          %2664 = sbr.rel (%p2662) target = $region44
        $region43: #{tpu_custom_call.1} parent=39 // pred_region
          _
        $region44: #{tpu_custom_call.1} parent=39 // pred_fallthru
          _
        // Predicated region
        $region45: #{tpu_custom_call.1} parent=39 // pred_check
          %p2665 = pneg %p179
        $region46: #{tpu_custom_call.1} parent=39 // pred_check_branch
          %2667 = sbr.rel (%p2665) target = $region48
        $region47: #{tpu_custom_call.1} parent=39 // pred_region
          %s2669 = ssub.s32 16, 16
          %2670 = vsyncadd %s2655, %s2669
          %s2671 = smul.addr %s25, 16
          %s2672 = scalar_lea.hbm %s6, %s2671
          %s2674 = sshll.u32 %s2657, 4
          %s2675 = int_to_ptr.vmem [resolvable:$true] %s2674
          %2677 = dma.vmem_to_hbm [thread:$0]  %s2675, 16, %s2672, %s2655
        $region48: #{tpu_custom_call.1} parent=39 // pred_fallthru
          _
        // Predicated region
        $region49: #{tpu_custom_call.1} parent=39 // pred_check
          %p2678 = pneg %p205
        $region50: #{tpu_custom_call.1} parent=39 // pred_check_branch
          %2680 = sbr.rel (%p2678) target = $region52
        $region51: #{tpu_custom_call.1} parent=39 // pred_region
          %s2682 = ssub.s32 16, 16
          %2683 = vsyncadd %s2659, %s2682
          %s2684 = smul.addr %s25, 16
          %s2685 = scalar_lea.hbm %s7, %s2684
          %s2687 = sshll.u32 %s2661, 4
          %s2688 = int_to_ptr.vmem [resolvable:$true] %s2687
          %2690 = dma.vmem_to_hbm [thread:$0]  %s2688, 16, %s2685, %s2659
        $region52: #{tpu_custom_call.1} parent=39 // pred_fallthru
          _
      $region40: #{tpu_custom_call.1} parent=5 // pred_fallthru
        _
      %p2691 = scmp.le.s32.totalorder 2, %s20
      // Predicated region
      $region53: #{tpu_custom_call.1} parent=5 // pred_check
        %p2692 = pneg %p2691
      $region54: #{tpu_custom_call.1} parent=5 // pred_check_branch
        %2694 = sbr.rel (%p2692) target = $region56
      $region55: #{tpu_custom_call.1} parent=5 // pred_region
        %s2695 = ssub.s32 %s20, 2
        // Predicated region
        $region57: #{tpu_custom_call.1} parent=55 // pred_check
          %p2696 = pneg %p159
        $region58: #{tpu_custom_call.1} parent=55 // pred_check_branch
          %2698 = sbr.rel (%p2696) target = $region60
        $region59: #{tpu_custom_call.1} parent=55 // pred_region
          %p2699 = scmp.lt.s32.totalorder %s26, 1
          %s2700 = scalar_select %p2699, %s26, 1
          %s2701 = smul.addr %s2700, 32
          %s2702 = smul.addr %s2701, 8
          %s2703 = scalar_lea.vmem %s5, %s2702
        $region60: #{tpu_custom_call.1} parent=55 // pred_fallthru
          _
        // Predicated region
        $region61: #{tpu_custom_call.1} parent=55 // pred_check
          %p2704 = pneg %p185
        $region62: #{tpu_custom_call.1} parent=55 // pred_check_branch
          %2706 = sbr.rel (%p2704) target = $region64
        $region63: #{tpu_custom_call.1} parent=55 // pred_region
          %s2707 = sand.u32 %s170, 1
          %s2708 = scalar_lea.sflag [#allocation4], %s2707
          %s2709 = sand.u32 %s170, 1
          %s2710 = scalar_lea.vmem [#allocation3], %s2709
          %2711 = dma.done %s2708, 16
        $region64: #{tpu_custom_call.1} parent=55 // pred_fallthru
          _
        // Predicated region
        $region65: #{tpu_custom_call.1} parent=55 // pred_check
          %p2712 = pneg %p211
        $region66: #{tpu_custom_call.1} parent=55 // pred_check_branch
          %2714 = sbr.rel (%p2712) target = $region68
        $region67: #{tpu_custom_call.1} parent=55 // pred_region
          %s2715 = sand.u32 %s196, 1
          %s2716 = scalar_lea.sflag [#allocation6], %s2715
          %s2717 = sand.u32 %s196, 1
          %s2718 = scalar_lea.vmem [#allocation5], %s2717
          %2719 = dma.done %s2716, 16
        $region68: #{tpu_custom_call.1} parent=55 // pred_fallthru
          _
      $region56: #{tpu_custom_call.1} parent=5 // pred_fallthru
        _
    $region6: #{tpu_custom_call.1} parent=1 // loop_footer
      %s24 = sadd.s32 1, %s20
    $region7: #{tpu_custom_call.1} parent=1 // loop_footer_branch
      %19 = sbr.rel target = $region3
    $region8: #{tpu_custom_call.1} parent=1 // loop_exit
      _
    %2720 = vsyncpa [#allocation4], 1
    %s2721 = scalar_lea.sflag [#allocation4], 1
    %2722 = vsyncpa %s2721, 1
    %2723 = vsyncpa [#allocation6], 1
    %s2724 = scalar_lea.sflag [#allocation6], 1
    %2725 = vsyncpa %s2724, 1

</llo_original>
